<compile_context>
chip_gen: v6e
topology: v6e:2x2x1
jax: 0.10.0
libtpu: 0.0.40
codegen_flags: <defaults>
</compile_context>

<pallas_src>
import functools
import math

import jax
import jax.numpy as jnp
from jax.experimental import pallas as pl
from jax.experimental.pallas import tpu as pltpu


def _mha_causal_kernel(x_ref, wq_ref, bq_ref, wk_ref, bk_ref, wv_ref, bv_ref,
                       wo_ref, bo_ref, *refs,
                       num_heads, head_dim, compute_dtype, approx_recip, with_attn):
    # Block shapes:
    #   x_ref   : (1, S, E)   full sequence (resident across qi; K/V built from it at qi==0)
    #   w*_ref  : (E, A) / (A, E) pre-cast to compute_dtype; b*_ref : (1, A)/(1, E) f32
    #   out_ref : (1, TQ, E)
    #   attn_ref: (1, H, TQ, S)          (only if with_attn)
    #   k_scr/v_scr: (S, A) compute_dtype persistent scratch; ctx_scr: (TQ, A) f32 scratch
    if with_attn:
        out_ref, attn_ref, k_scr, v_scr, ctx_scr = refs
    else:
        out_ref, k_scr, v_scr, ctx_scr = refs
        attn_ref = None

    qi = pl.program_id(1)
    TQ = out_ref.shape[1]
    S = x_ref.shape[1]
    Dh = head_dim
    inv_sqrt_dh = 1.0 / math.sqrt(Dh)

    # ---- K/V projections: once per batch element, reused by all query tiles. ----
    @pl.when(qi == 0)
    def _():
        x_full = x_ref[0].astype(compute_dtype)                              # (S, E)
        k = jnp.dot(x_full, wk_ref[...], preferred_element_type=jnp.float32) + bk_ref[...]
        v = jnp.dot(x_full, wv_ref[...], preferred_element_type=jnp.float32) + bv_ref[...]
        k_scr[...] = k.astype(compute_dtype)
        v_scr[...] = v.astype(compute_dtype)

    # ---- Q projection for this query tile only. ----
    q_start = pl.multiple_of(qi * TQ, TQ)
    x_q = x_ref[0, pl.ds(q_start, TQ), :].astype(compute_dtype)              # (TQ, E)
    q = jnp.dot(x_q, wq_ref[...], preferred_element_type=jnp.float32) + bq_ref[...]
    q = (q * inv_sqrt_dh).astype(compute_dtype)     # fold 1/sqrt(Dh) into q (TQ*A muls)

    k_all = k_scr[...]                                                       # (S, A)
    v_all = v_scr[...]                                                       # (S, A)

    # Causal mask for this query tile (col <= global row).
    row = q_start + jax.lax.broadcasted_iota(jnp.int32, (TQ, S), 0)
    col = jax.lax.broadcasted_iota(jnp.int32, (TQ, S), 1)
    causal = col <= row
    # TODO(synk): fully-masked KV columns (>= (qi+1)*TQ) are still computed then masked;
    # a flash-style KV grid axis could skip them when attention weights are not returned.

    for h in range(num_heads):          # static unroll; avoids any head-axis transpose
        sl = slice(h * Dh, (h + 1) * Dh)
        q_h = q[:, sl]                  # (TQ, Dh)
        k_h = k_all[:, sl]              # (S,  Dh)
        v_h = v_all[:, sl]              # (S,  Dh)

        # QK^T without materializing a transpose: contract the Dh axis of both operands.
        scores = jax.lax.dot_general(
            q_h, k_h, dimension_numbers=(((1,), (1,)), ((), ())),
            preferred_element_type=jnp.float32)                              # (TQ, S) f32
        scores = jnp.where(causal, scores, -jnp.inf)

        # Softmax in f32 (exp on EUP; reciprocal-multiply instead of S^2 divides).
        m = jnp.max(scores, axis=-1, keepdims=True)
        e = jnp.exp(scores - m)
        denom = jnp.sum(e, axis=-1, keepdims=True)
        attn_f32 = e * pl.reciprocal(denom, approx=approx_recip)             # (TQ, S) f32

        # Single downcast reused for both the attn-weights store and the AV matmul.
        attn_c = attn_f32.astype(compute_dtype)
        # TODO(synk): train-mode nn.Dropout(p) on attention weights omitted (eval semantics).
        if attn_ref is not None:
            attn_ref[0, h] = attn_c.astype(attn_ref.dtype)

        ctx_scr[:, sl] = jnp.dot(attn_c, v_h, preferred_element_type=jnp.float32)

    # fc_out projection fused in-kernel (reads context from VMEM scratch).
    out = jnp.dot(ctx_scr[...].astype(compute_dtype), wo_ref[...],
                  preferred_element_type=jnp.float32) + bo_ref[...]
    out_ref[0] = out.astype(out_ref.dtype)


def _pick_q_tile(S):
    # 128 fills the v5e MXU and keeps per-step VMEM modest on v7x; sweep / pass q_tile=256
    # on v6e if desired. Falls back to the full (tiny) sequence otherwise.
    for t in (128, 64, 32, 16, 8):
        if S % t == 0:
            return t
    return S


def _default_vmem_limit_bytes():
    # Generation-dependent scoped-VMEM request: leave headroom on 64 MiB parts (v7x),
    # use more of the 128 MiB parts (v5e/v6e).
    cap = None
    try:
        cap = getattr(pltpu.get_tpu_info(), "vmem_capacity_bytes", None)
    except Exception:
        cap = None
    if cap is None:
        cap = 64 * 1024 * 1024
    if cap >= 100 * 1024 * 1024:
        return 96 * 1024 * 1024
    return 48 * 1024 * 1024


def multi_head_causal_attention(x, wq, bq, wk, bk, wv, bv, wo, bo, *,
                                num_heads, q_tile=None,
                                matmul_dtype=jnp.bfloat16,
                                attn_dtype=None,
                                return_attn_weights=True,
                                vmem_limit_bytes=None):
    """x: (B,S,E); wq/wk/wv: (E,A); bq/bk/bv: (A,); wo: (A,E); bo: (E,).
    Returns (out (B,S,E) f32, attention_weights (B,H,S,S) attn_dtype) — or just `out`
    when return_attn_weights=False."""
    B, S, E = x.shape
    A = wq.shape[1]
    assert A % num_heads == 0
    Dh = A // num_heads

    if q_tile is None:
        q_tile = _pick_q_tile(S)
    assert S % q_tile == 0 and (q_tile % 8 == 0 or q_tile == S)
    n_q = S // q_tile

    if attn_dtype is None:
        attn_dtype = matmul_dtype
    if vmem_limit_bytes is None:
        vmem_limit_bytes = _default_vmem_limit_bytes()
    approx_recip = (matmul_dtype != jnp.float32)

    # Pre-cast weights to the MXU compute dtype (halves weight DMA / VMEM, no per-step cast).
    wq_c = wq.astype(matmul_dtype)
    wk_c = wk.astype(matmul_dtype)
    wv_c = wv.astype(matmul_dtype)
    wo_c = wo.astype(matmul_dtype)
    # Biases stay f32 (added onto the f32 accumulators).
    bq2 = bq.reshape(1, A).astype(jnp.float32)
    bk2 = bk.reshape(1, A).astype(jnp.float32)
    bv2 = bv.reshape(1, A).astype(jnp.float32)
    bo2 = bo.reshape(1, E).astype(jnp.float32)

    kernel = functools.partial(_mha_causal_kernel, num_heads=num_heads, head_dim=Dh,
                               compute_dtype=matmul_dtype, approx_recip=approx_recip,
                               with_attn=return_attn_weights)

    w_in_spec = pl.BlockSpec((E, A), lambda b, qi: (0, 0))
    b_in_spec = pl.BlockSpec((1, A), lambda b, qi: (0, 0))

    out_spec = pl.BlockSpec((1, q_tile, E), lambda b, qi: (b, qi, 0))
    if return_attn_weights:
        out_shape = (
            jax.ShapeDtypeStruct((B, S, E), jnp.float32),
            jax.ShapeDtypeStruct((B, num_heads, S, S), attn_dtype),
        )
        out_specs = (
            out_spec,
            pl.BlockSpec((1, num_heads, q_tile, S), lambda b, qi: (b, 0, qi, 0)),
        )
    else:
        out_shape = jax.ShapeDtypeStruct((B, S, E), jnp.float32)
        out_specs = out_spec

    return pl.pallas_call(
        kernel,
        out_shape=out_shape,
        grid=(B, n_q),
        in_specs=[
            pl.BlockSpec((1, S, E), lambda b, qi: (b, 0, 0)),   # x (full seq; resident per b)
            w_in_spec, b_in_spec,                               # Wq, bq
            w_in_spec, b_in_spec,                               # Wk, bk
            w_in_spec, b_in_spec,                               # Wv, bv
            pl.BlockSpec((A, E), lambda b, qi: (0, 0)),         # Wo
            pl.BlockSpec((1, E), lambda b, qi: (0, 0)),         # bo
        ],
        out_specs=out_specs,
        scratch_shapes=[
            pltpu.VMEM((S, A), matmul_dtype),    # K (per batch element, reused across qi)
            pltpu.VMEM((S, A), matmul_dtype),    # V
            pltpu.VMEM((q_tile, A), jnp.float32),  # per-tile multi-head context
        ],
        compiler_params=pltpu.CompilerParams(
            # qi axis must run sequentially on one core so the K/V scratch computed at
            # qi==0 is valid for qi>0; batch axis provides megacore / 2-TC parallelism.
            dimension_semantics=("parallel", "arbitrary"),
            vmem_limit_bytes=vmem_limit_bytes,
        ),
    )(x, wq_c, bq2, wk_c, bk2, wv_c, bv2, wo_c, bo2)


def reference(x, wq, bq, wk, bk, wv, bv, wo, bo, num_heads):
    B, S, E = x.shape
    A = wq.shape[1]
    Dh = A // num_heads
    q = x @ wq + bq
    k = x @ wk + bk
    v = x @ wv + bv

    def split(t):
        return t.reshape(B, S, num_heads, Dh).transpose(0, 2, 1, 3)

    qh, kh, vh = split(q), split(k), split(v)
    scores = jnp.einsum("bhqd,bhkd->bhqk", qh, kh) / math.sqrt(Dh)
    mask = jnp.tril(jnp.ones((S, S)))
    scores = jnp.where(mask == 0, -jnp.inf, scores)
    attn = jax.nn.softmax(scores, axis=-1)
    ctx = jnp.einsum("bhqk,bhkd->bhqd", attn, vh)
    ctx = ctx.transpose(0, 2, 1, 3).reshape(B, S, A)
    out = ctx @ wo + bo
    return out, attn


if __name__ == "__main__":
    batch, seq, embedding_dim, attention_dim, num_heads = 2, 16, 32, 32, 4

    key = jax.random.PRNGKey(0)
    kx, kq, kbq, kk, kbk, kv, kbv, ko, kbo = jax.random.split(key, 9)

    x = jax.random.normal(kx, (batch, seq, embedding_dim), dtype=jnp.float32)

    # PyTorch Linear init bounds; W stored transposed for row-major matmul inside the kernel.
    b_in = 1.0 / math.sqrt(embedding_dim)
    b_att = 1.0 / math.sqrt(attention_dim)
    wq = jax.random.uniform(kq, (embedding_dim, attention_dim), minval=-b_in, maxval=b_in, dtype=jnp.float32)
    bq = jax.random.uniform(kbq, (attention_dim,), minval=-b_in, maxval=b_in, dtype=jnp.float32)
    wk = jax.random.uniform(kk, (embedding_dim, attention_dim), minval=-b_in, maxval=b_in, dtype=jnp.float32)
    bk = jax.random.uniform(kbk, (attention_dim,), minval=-b_in, maxval=b_in, dtype=jnp.float32)
    wv = jax.random.uniform(kv, (embedding_dim, attention_dim), minval=-b_in, maxval=b_in, dtype=jnp.float32)
    bv = jax.random.uniform(kbv, (attention_dim,), minval=-b_in, maxval=b_in, dtype=jnp.float32)
    wo = jax.random.uniform(ko, (attention_dim, embedding_dim), minval=-b_att, maxval=b_att, dtype=jnp.float32)
    bo = jax.random.uniform(kbo, (embedding_dim,), minval=-b_att, maxval=b_att, dtype=jnp.float32)

    out_ref_, attn_ref_ = reference(x, wq, bq, wk, bk, wv, bv, wo, bo, num_heads)

    # 1) Exact f32 path (q_tile=8 exercises the q-tiled grid + K/V scratch reuse across qi).
    out32, attn32 = multi_head_causal_attention(
        x, wq, bq, wk, bk, wv, bv, wo, bo,
        num_heads=num_heads, q_tile=8,
        matmul_dtype=jnp.float32, attn_dtype=jnp.float32)
    jax.block_until_ready((out32, attn32))
    assert jnp.allclose(out32, out_ref_, atol=1e-4, rtol=1e-4)
    assert jnp.allclose(attn32, attn_ref_, atol=1e-4, rtol=1e-4)

    # 2) bf16 MXU path with bf16 attention-weights output (performance default).
    out_bf, attn_bf = multi_head_causal_attention(
        x, wq, bq, wk, bk, wv, bv, wo, bo,
        num_heads=num_heads, q_tile=8)
    jax.block_until_ready((out_bf, attn_bf))
    assert jnp.allclose(out_bf, out_ref_, atol=5e-2, rtol=5e-2)
    assert jnp.allclose(attn_bf.astype(jnp.float32), attn_ref_, atol=5e-2, rtol=5e-2)

    # 3) Attention-weights-free path (removes the dominant (B,H,S,S) HBM writeback).
    out_only = multi_head_causal_attention(
        x, wq, bq, wk, bk, wv, bv, wo, bo,
        num_heads=num_heads, q_tile=8, return_attn_weights=False)
    jax.block_until_ready(out_only)
    assert jnp.allclose(out_only, out_ref_, atol=5e-2, rtol=5e-2)

    print("KERNEL_OK")
</pallas_src>

<mosaic_0001>
module attributes {stable_mosaic.version = 11 : i64} {
  func.func @_mha_causal_kernel(%arg0: i32, %arg1: i32, %arg2: memref<1x16x32xf32, #tpu.memory_space<vmem>>, %arg3: memref<32x32xf32, #tpu.memory_space<vmem>>, %arg4: memref<1x32xf32, #tpu.memory_space<vmem>>, %arg5: memref<32x32xf32, #tpu.memory_space<vmem>>, %arg6: memref<1x32xf32, #tpu.memory_space<vmem>>, %arg7: memref<32x32xf32, #tpu.memory_space<vmem>>, %arg8: memref<1x32xf32, #tpu.memory_space<vmem>>, %arg9: memref<32x32xf32, #tpu.memory_space<vmem>>, %arg10: memref<1x32xf32, #tpu.memory_space<vmem>>, %arg11: memref<1x8x32xf32, #tpu.memory_space<vmem>>, %arg12: memref<1x4x8x16xf32, #tpu.memory_space<vmem>>, %arg13: memref<16x32xf32, #tpu.memory_space<vmem>>, %arg14: memref<16x32xf32, #tpu.memory_space<vmem>>, %arg15: memref<8x32xf32, #tpu.memory_space<vmem>>) attributes {dimension_semantics = [#tpu.dimension_semantics<parallel>, #tpu.dimension_semantics<arbitrary>], iteration_bounds = array<i64: 2, 2>, scalar_prefetch = 0 : i64, scratch_operands = 3 : i64, tpu.core_type = #tpu.core_type<tc>, window_params = [{transform_indices = @transform_0, window_bounds = array<i64: 1, 16, 32>}, {pipeline_mode = #tpu.pipeline_mode<synchronous>, transform_indices = @transform_1, window_bounds = array<i64: 32, 32>}, {pipeline_mode = #tpu.pipeline_mode<synchronous>, transform_indices = @transform_2, window_bounds = array<i64: 1, 32>}, {pipeline_mode = #tpu.pipeline_mode<synchronous>, transform_indices = @transform_3, window_bounds = array<i64: 32, 32>}, {pipeline_mode = #tpu.pipeline_mode<synchronous>, transform_indices = @transform_4, window_bounds = array<i64: 1, 32>}, {pipeline_mode = #tpu.pipeline_mode<synchronous>, transform_indices = @transform_5, window_bounds = array<i64: 32, 32>}, {pipeline_mode = #tpu.pipeline_mode<synchronous>, transform_indices = @transform_6, window_bounds = array<i64: 1, 32>}, {pipeline_mode = #tpu.pipeline_mode<synchronous>, transform_indices = @transform_7, window_bounds = array<i64: 32, 32>}, {pipeline_mode = #tpu.pipeline_mode<synchronous>, transform_indices = @transform_8, window_bounds = array<i64: 1, 32>}, {transform_indices = @transform_9, window_bounds = array<i64: 1, 8, 32>}, {transform_indices = @transform_10, window_bounds = array<i64: 1, 4, 8, 16>}]} {
    %c0_i32 = arith.constant 0 : i32
    %0 = arith.cmpi eq, %arg1, %c0_i32 : i32
    %1 = arith.extui %0 : i1 to i32
    %c0_i32_0 = arith.constant 0 : i32
    %2 = arith.cmpi ne, %1, %c0_i32_0 : i32
    scf.if %2 {
      %c0_59 = arith.constant 0 : index
      %c0_60 = arith.constant 0 : index
      %c0_61 = arith.constant 0 : index
      %115 = vector.load %arg2[%c0_59, %c0_60, %c0_61] : memref<1x16x32xf32, #tpu.memory_space<vmem>>, vector<1x16x32xf32>
      %116 = vector.shape_cast %115 : vector<1x16x32xf32> to vector<16x32xf32>
      %c0_62 = arith.constant 0 : index
      %c0_63 = arith.constant 0 : index
      %117 = vector.load %arg5[%c0_62, %c0_63] : memref<32x32xf32, #tpu.memory_space<vmem>>, vector<32x32xf32>
      %cst_64 = arith.constant dense<0.000000e+00> : vector<16x32xf32>
      %118 = tpu.matmul %116, %117, %cst_64 {dimension_numbers = #tpu.dot_dimension_numbers<[1], [0], [0], [1], [0, 0, 1, 1], [], []>} : vector<16x32xf32>, vector<32x32xf32>, vector<16x32xf32> -> vector<16x32xf32>
      %c0_65 = arith.constant 0 : index
      %c0_66 = arith.constant 0 : index
      %119 = vector.load %arg6[%c0_65, %c0_66] : memref<1x32xf32, #tpu.memory_space<vmem>>, vector<1x32xf32>
      %120 = vector.broadcast %119 : vector<1x32xf32> to vector<16x32xf32>
      %121 = arith.addf %118, %120 : vector<16x32xf32>
      %c0_67 = arith.constant 0 : index
      %c0_68 = arith.constant 0 : index
      %122 = vector.load %arg7[%c0_67, %c0_68] : memref<32x32xf32, #tpu.memory_space<vmem>>, vector<32x32xf32>
      %cst_69 = arith.constant dense<0.000000e+00> : vector<16x32xf32>
      %123 = tpu.matmul %116, %122, %cst_69 {dimension_numbers = #tpu.dot_dimension_numbers<[1], [0], [0], [1], [0, 0, 1, 1], [], []>} : vector<16x32xf32>, vector<32x32xf32>, vector<16x32xf32> -> vector<16x32xf32>
      %c0_70 = arith.constant 0 : index
      %c0_71 = arith.constant 0 : index
      %124 = vector.load %arg8[%c0_70, %c0_71] : memref<1x32xf32, #tpu.memory_space<vmem>>, vector<1x32xf32>
      %125 = vector.broadcast %124 : vector<1x32xf32> to vector<16x32xf32>
      %126 = arith.addf %123, %125 : vector<16x32xf32>
      %c0_72 = arith.constant 0 : index
      %c0_73 = arith.constant 0 : index
      %127 = vector.load %arg13[%c0_72, %c0_73] : memref<16x32xf32, #tpu.memory_space<vmem>>, vector<16x32xf32>
      tpu.vector_store %arg13[%c0_72, %c0_73], %121 {strides = array<i32>} : memref<16x32xf32, #tpu.memory_space<vmem>>, vector<16x32xf32>,
      %c0_74 = arith.constant 0 : index
      %c0_75 = arith.constant 0 : index
      %128 = vector.load %arg14[%c0_74, %c0_75] : memref<16x32xf32, #tpu.memory_space<vmem>>, vector<16x32xf32>
      tpu.vector_store %arg14[%c0_74, %c0_75], %126 {strides = array<i32>} : memref<16x32xf32, #tpu.memory_space<vmem>>, vector<16x32xf32>,
    } else {
    }
    %c8_i32 = arith.constant 8 : i32
    %3 = arith.muli %arg1, %c8_i32 : i32
    %4 = tpu.assume_multiple %3, 8 : i32
    %c0 = arith.constant 0 : index
    %5 = arith.index_cast %4 : i32 to index
    %c0_1 = arith.constant 0 : index
    %6 = vector.load %arg2[%c0, %5, %c0_1] : memref<1x16x32xf32, #tpu.memory_space<vmem>>, vector<1x8x32xf32>
    %7 = vector.shape_cast %6 : vector<1x8x32xf32> to vector<8x32xf32>
    %c0_2 = arith.constant 0 : index
    %c0_3 = arith.constant 0 : index
    %8 = vector.load %arg3[%c0_2, %c0_3] : memref<32x32xf32, #tpu.memory_space<vmem>>, vector<32x32xf32>
    %cst = arith.constant dense<0.000000e+00> : vector<8x32xf32>
    %9 = tpu.matmul %7, %8, %cst {dimension_numbers = #tpu.dot_dimension_numbers<[1], [0], [0], [1], [0, 0, 1, 1], [], []>} : vector<8x32xf32>, vector<32x32xf32>, vector<8x32xf32> -> vector<8x32xf32>
    %c0_4 = arith.constant 0 : index
    %c0_5 = arith.constant 0 : index
    %10 = vector.load %arg4[%c0_4, %c0_5] : memref<1x32xf32, #tpu.memory_space<vmem>>, vector<1x32xf32>
    %11 = vector.broadcast %10 : vector<1x32xf32> to vector<8x32xf32>
    %12 = arith.addf %9, %11 : vector<8x32xf32>
    %cst_6 = arith.constant 0.353553385 : f32
    %13 = vector.broadcast %cst_6 : f32 to vector<8x32xf32>
    %14 = arith.mulf %12, %13 : vector<8x32xf32>
    %c0_7 = arith.constant 0 : index
    %c0_8 = arith.constant 0 : index
    %15 = vector.load %arg13[%c0_7, %c0_8] : memref<16x32xf32, #tpu.memory_space<vmem>>, vector<16x32xf32>
    %c0_9 = arith.constant 0 : index
    %c0_10 = arith.constant 0 : index
    %16 = vector.load %arg14[%c0_9, %c0_10] : memref<16x32xf32, #tpu.memory_space<vmem>>, vector<16x32xf32>
    %17 = tpu.iota {dimensions = array<i32: 0>} : vector<8x16xi32>
    %18 = vector.broadcast %4 : i32 to vector<8x16xi32>
    %19 = arith.addi %18, %17 : vector<8x16xi32>
    %20 = tpu.iota {dimensions = array<i32: 1>} : vector<8x16xi32>
    %21 = arith.cmpi sle, %20, %19 : vector<8x16xi32>
    %22 = vector.extract_strided_slice %14 {offsets = [0, 0], sizes = [8, 8], strides = [1, 1]} : vector<8x32xf32> to vector<8x8xf32>
    %23 = vector.extract_strided_slice %15 {offsets = [0, 0], sizes = [16, 8], strides = [1, 1]} : vector<16x32xf32> to vector<16x8xf32>
    %24 = vector.extract_strided_slice %16 {offsets = [0, 0], sizes = [16, 8], strides = [1, 1]} : vector<16x32xf32> to vector<16x8xf32>
    %cst_11 = arith.constant dense<0.000000e+00> : vector<8x16xf32>
    %25 = tpu.matmul %22, %23, %cst_11 {dimension_numbers = #tpu.dot_dimension_numbers<[1], [1], [0], [0], [0, 0, 1, 0], [], []>} : vector<8x8xf32>, vector<16x8xf32>, vector<8x16xf32> -> vector<8x16xf32>
    %cst_12 = arith.constant 0xFF800000 : f32
    %26 = vector.broadcast %cst_12 : f32 to vector<8x16xf32>
    %27 = arith.select %21, %25, %26 : vector<8x16xi1>, vector<8x16xf32>
    %cst_13 = arith.constant dense<0xFF800000> : vector<8xf32>
    %28 = vector.multi_reduction <maximumf>, %27, %cst_13 [1] : vector<8x16xf32> to vector<8xf32>
    %29 = vector.shape_cast %28 : vector<8xf32> to vector<8x1xf32>
    %30 = vector.broadcast %29 : vector<8x1xf32> to vector<8x16xf32>
    %31 = arith.subf %27, %30 : vector<8x16xf32>
    %32 = math.exp %31 : vector<8x16xf32>
    %cst_14 = arith.constant dense<0.000000e+00> : vector<8xf32>
    %33 = vector.multi_reduction <add>, %32, %cst_14 [1] : vector<8x16xf32> to vector<8xf32>
    %34 = vector.shape_cast %33 : vector<8xf32> to vector<8x1xf32>
    %35 = tpu.reciprocal %34 : vector<8x1xf32> -> vector<8x1xf32>
    %36 = vector.broadcast %35 : vector<8x1xf32> to vector<8x16xf32>
    %37 = arith.mulf %32, %36 : vector<8x16xf32>
    %c0_15 = arith.constant 0 : index
    %c0_16 = arith.constant 0 : index
    %c0_17 = arith.constant 0 : index
    %c0_18 = arith.constant 0 : index
    %38 = vector.load %arg12[%c0_15, %c0_16, %c0_17, %c0_18] : memref<1x4x8x16xf32, #tpu.memory_space<vmem>>, vector<1x1x8x16xf32>
    %39 = vector.shape_cast %38 : vector<1x1x8x16xf32> to vector<8x16xf32>
    %40 = vector.shape_cast %37 : vector<8x16xf32> to vector<1x1x8x16xf32>
    tpu.vector_store %arg12[%c0_15, %c0_16, %c0_17, %c0_18], %40 {strides = array<i32>} : memref<1x4x8x16xf32, #tpu.memory_space<vmem>>, vector<1x1x8x16xf32>,
    %cst_19 = arith.constant dense<0.000000e+00> : vector<8x8xf32>
    %41 = tpu.matmul %37, %24, %cst_19 {dimension_numbers = #tpu.dot_dimension_numbers<[1], [0], [0], [1], [0, 0, 1, 1], [], []>} : vector<8x16xf32>, vector<16x8xf32>, vector<8x8xf32> -> vector<8x8xf32>
    %c0_20 = arith.constant 0 : index
    %c0_21 = arith.constant 0 : index
    %42 = vector.load %arg15[%c0_20, %c0_21] : memref<8x32xf32, #tpu.memory_space<vmem>>, vector<8x8xf32>
    tpu.vector_store %arg15[%c0_20, %c0_21], %41 {strides = array<i32>} : memref<8x32xf32, #tpu.memory_space<vmem>>, vector<8x8xf32>,
    %43 = vector.extract_strided_slice %14 {offsets = [0, 8], sizes = [8, 8], strides = [1, 1]} : vector<8x32xf32> to vector<8x8xf32>
    %44 = vector.extract_strided_slice %15 {offsets = [0, 8], sizes = [16, 8], strides = [1, 1]} : vector<16x32xf32> to vector<16x8xf32>
    %45 = vector.extract_strided_slice %16 {offsets = [0, 8], sizes = [16, 8], strides = [1, 1]} : vector<16x32xf32> to vector<16x8xf32>
    %cst_22 = arith.constant dense<0.000000e+00> : vector<8x16xf32>
    %46 = tpu.matmul %43, %44, %cst_22 {dimension_numbers = #tpu.dot_dimension_numbers<[1], [1], [0], [0], [0, 0, 1, 0], [], []>} : vector<8x8xf32>, vector<16x8xf32>, vector<8x16xf32> -> vector<8x16xf32>
    %cst_23 = arith.constant 0xFF800000 : f32
    %47 = vector.broadcast %cst_23 : f32 to vector<8x16xf32>
    %48 = arith.select %21, %46, %47 : vector<8x16xi1>, vector<8x16xf32>
    %cst_24 = arith.constant dense<0xFF800000> : vector<8xf32>
    %49 = vector.multi_reduction <maximumf>, %48, %cst_24 [1] : vector<8x16xf32> to vector<8xf32>
    %50 = vector.shape_cast %49 : vector<8xf32> to vector<8x1xf32>
    %51 = vector.broadcast %50 : vector<8x1xf32> to vector<8x16xf32>
    %52 = arith.subf %48, %51 : vector<8x16xf32>
    %53 = math.exp %52 : vector<8x16xf32>
    %cst_25 = arith.constant dense<0.000000e+00> : vector<8xf32>
    %54 = vector.multi_reduction <add>, %53, %cst_25 [1] : vector<8x16xf32> to vector<8xf32>
    %55 = vector.shape_cast %54 : vector<8xf32> to vector<8x1xf32>
    %56 = tpu.reciprocal %55 : vector<8x1xf32> -> vector<8x1xf32>
    %57 = vector.broadcast %56 : vector<8x1xf32> to vector<8x16xf32>
    %58 = arith.mulf %53, %57 : vector<8x16xf32>
    %c0_26 = arith.constant 0 : index
    %c1 = arith.constant 1 : index
    %c0_27 = arith.constant 0 : index
    %c0_28 = arith.constant 0 : index
    %59 = vector.load %arg12[%c0_26, %c1, %c0_27, %c0_28] : memref<1x4x8x16xf32, #tpu.memory_space<vmem>>, vector<1x1x8x16xf32>
    %60 = vector.shape_cast %59 : vector<1x1x8x16xf32> to vector<8x16xf32>
    %61 = vector.shape_cast %58 : vector<8x16xf32> to vector<1x1x8x16xf32>
    tpu.vector_store %arg12[%c0_26, %c1, %c0_27, %c0_28], %61 {strides = array<i32>} : memref<1x4x8x16xf32, #tpu.memory_space<vmem>>, vector<1x1x8x16xf32>,
    %cst_29 = arith.constant dense<0.000000e+00> : vector<8x8xf32>
    %62 = tpu.matmul %58, %45, %cst_29 {dimension_numbers = #tpu.dot_dimension_numbers<[1], [0], [0], [1], [0, 0, 1, 1], [], []>} : vector<8x16xf32>, vector<16x8xf32>, vector<8x8xf32> -> vector<8x8xf32>
    %c0_30 = arith.constant 0 : index
    %c8 = arith.constant 8 : index
    %63 = vector.load %arg15[%c0_30, %c8] : memref<8x32xf32, #tpu.memory_space<vmem>>, vector<8x8xf32>
    tpu.vector_store %arg15[%c0_30, %c8], %62 {strides = array<i32>} : memref<8x32xf32, #tpu.memory_space<vmem>>, vector<8x8xf32>,
    %64 = vector.extract_strided_slice %14 {offsets = [0, 16], sizes = [8, 8], strides = [1, 1]} : vector<8x32xf32> to vector<8x8xf32>
    %65 = vector.extract_strided_slice %15 {offsets = [0, 16], sizes = [16, 8], strides = [1, 1]} : vector<16x32xf32> to vector<16x8xf32>
    %66 = vector.extract_strided_slice %16 {offsets = [0, 16], sizes = [16, 8], strides = [1, 1]} : vector<16x32xf32> to vector<16x8xf32>
    %cst_31 = arith.constant dense<0.000000e+00> : vector<8x16xf32>
    %67 = tpu.matmul %64, %65, %cst_31 {dimension_numbers = #tpu.dot_dimension_numbers<[1], [1], [0], [0], [0, 0, 1, 0], [], []>} : vector<8x8xf32>, vector<16x8xf32>, vector<8x16xf32> -> vector<8x16xf32>
    %cst_32 = arith.constant 0xFF800000 : f32
    %68 = vector.broadcast %cst_32 : f32 to vector<8x16xf32>
    %69 = arith.select %21, %67, %68 : vector<8x16xi1>, vector<8x16xf32>
    %cst_33 = arith.constant dense<0xFF800000> : vector<8xf32>
    %70 = vector.multi_reduction <maximumf>, %69, %cst_33 [1] : vector<8x16xf32> to vector<8xf32>
    %71 = vector.shape_cast %70 : vector<8xf32> to vector<8x1xf32>
    %72 = vector.broadcast %71 : vector<8x1xf32> to vector<8x16xf32>
    %73 = arith.subf %69, %72 : vector<8x16xf32>
    %74 = math.exp %73 : vector<8x16xf32>
    %cst_34 = arith.constant dense<0.000000e+00> : vector<8xf32>
    %75 = vector.multi_reduction <add>, %74, %cst_34 [1] : vector<8x16xf32> to vector<8xf32>
    %76 = vector.shape_cast %75 : vector<8xf32> to vector<8x1xf32>
    %77 = tpu.reciprocal %76 : vector<8x1xf32> -> vector<8x1xf32>
    %78 = vector.broadcast %77 : vector<8x1xf32> to vector<8x16xf32>
    %79 = arith.mulf %74, %78 : vector<8x16xf32>
    %c0_35 = arith.constant 0 : index
    %c2 = arith.constant 2 : index
    %c0_36 = arith.constant 0 : index
    %c0_37 = arith.constant 0 : index
    %80 = vector.load %arg12[%c0_35, %c2, %c0_36, %c0_37] : memref<1x4x8x16xf32, #tpu.memory_space<vmem>>, vector<1x1x8x16xf32>
    %81 = vector.shape_cast %80 : vector<1x1x8x16xf32> to vector<8x16xf32>
    %82 = vector.shape_cast %79 : vector<8x16xf32> to vector<1x1x8x16xf32>
    tpu.vector_store %arg12[%c0_35, %c2, %c0_36, %c0_37], %82 {strides = array<i32>} : memref<1x4x8x16xf32, #tpu.memory_space<vmem>>, vector<1x1x8x16xf32>,
    %cst_38 = arith.constant dense<0.000000e+00> : vector<8x8xf32>
    %83 = tpu.matmul %79, %66, %cst_38 {dimension_numbers = #tpu.dot_dimension_numbers<[1], [0], [0], [1], [0, 0, 1, 1], [], []>} : vector<8x16xf32>, vector<16x8xf32>, vector<8x8xf32> -> vector<8x8xf32>
    %c0_39 = arith.constant 0 : index
    %c16 = arith.constant 16 : index
    %84 = vector.load %arg15[%c0_39, %c16] : memref<8x32xf32, #tpu.memory_space<vmem>>, vector<8x8xf32>
    tpu.vector_store %arg15[%c0_39, %c16], %83 {strides = array<i32>} : memref<8x32xf32, #tpu.memory_space<vmem>>, vector<8x8xf32>,
    %85 = vector.extract_strided_slice %14 {offsets = [0, 24], sizes = [8, 8], strides = [1, 1]} : vector<8x32xf32> to vector<8x8xf32>
    %86 = vector.extract_strided_slice %15 {offsets = [0, 24], sizes = [16, 8], strides = [1, 1]} : vector<16x32xf32> to vector<16x8xf32>
    %87 = vector.extract_strided_slice %16 {offsets = [0, 24], sizes = [16, 8], strides = [1, 1]} : vector<16x32xf32> to vector<16x8xf32>
    %cst_40 = arith.constant dense<0.000000e+00> : vector<8x16xf32>
    %88 = tpu.matmul %85, %86, %cst_40 {dimension_numbers = #tpu.dot_dimension_numbers<[1], [1], [0], [0], [0, 0, 1, 0], [], []>} : vector<8x8xf32>, vector<16x8xf32>, vector<8x16xf32> -> vector<8x16xf32>
    %cst_41 = arith.constant 0xFF800000 : f32
    %89 = vector.broadcast %cst_41 : f32 to vector<8x16xf32>
    %90 = arith.select %21, %88, %89 : vector<8x16xi1>, vector<8x16xf32>
    %cst_42 = arith.constant dense<0xFF800000> : vector<8xf32>
    %91 = vector.multi_reduction <maximumf>, %90, %cst_42 [1] : vector<8x16xf32> to vector<8xf32>
    %92 = vector.shape_cast %91 : vector<8xf32> to vector<8x1xf32>
    %93 = vector.broadcast %92 : vector<8x1xf32> to vector<8x16xf32>
    %94 = arith.subf %90, %93 : vector<8x16xf32>
    %95 = math.exp %94 : vector<8x16xf32>
    %cst_43 = arith.constant dense<0.000000e+00> : vector<8xf32>
    %96 = vector.multi_reduction <add>, %95, %cst_43 [1] : vector<8x16xf32> to vector<8xf32>
    %97 = vector.shape_cast %96 : vector<8xf32> to vector<8x1xf32>
    %98 = tpu.reciprocal %97 : vector<8x1xf32> -> vector<8x1xf32>
    %99 = vector.broadcast %98 : vector<8x1xf32> to vector<8x16xf32>
    %100 = arith.mulf %95, %99 : vector<8x16xf32>
    %c0_44 = arith.constant 0 : index
    %c3 = arith.constant 3 : index
    %c0_45 = arith.constant 0 : index
    %c0_46 = arith.constant 0 : index
    %101 = vector.load %arg12[%c0_44, %c3, %c0_45, %c0_46] : memref<1x4x8x16xf32, #tpu.memory_space<vmem>>, vector<1x1x8x16xf32>
    %102 = vector.shape_cast %101 : vector<1x1x8x16xf32> to vector<8x16xf32>
    %103 = vector.shape_cast %100 : vector<8x16xf32> to vector<1x1x8x16xf32>
    tpu.vector_store %arg12[%c0_44, %c3, %c0_45, %c0_46], %103 {strides = array<i32>} : memref<1x4x8x16xf32, #tpu.memory_space<vmem>>, vector<1x1x8x16xf32>,
    %cst_47 = arith.constant dense<0.000000e+00> : vector<8x8xf32>
    %104 = tpu.matmul %100, %87, %cst_47 {dimension_numbers = #tpu.dot_dimension_numbers<[1], [0], [0], [1], [0, 0, 1, 1], [], []>} : vector<8x16xf32>, vector<16x8xf32>, vector<8x8xf32> -> vector<8x8xf32>
    %c0_48 = arith.constant 0 : index
    %c24 = arith.constant 24 : index
    %105 = vector.load %arg15[%c0_48, %c24] : memref<8x32xf32, #tpu.memory_space<vmem>>, vector<8x8xf32>
    tpu.vector_store %arg15[%c0_48, %c24], %104 {strides = array<i32>} : memref<8x32xf32, #tpu.memory_space<vmem>>, vector<8x8xf32>,
    %c0_49 = arith.constant 0 : index
    %c0_50 = arith.constant 0 : index
    %106 = vector.load %arg15[%c0_49, %c0_50] : memref<8x32xf32, #tpu.memory_space<vmem>>, vector<8x32xf32>
    %c0_51 = arith.constant 0 : index
    %c0_52 = arith.constant 0 : index
    %107 = vector.load %arg9[%c0_51, %c0_52] : memref<32x32xf32, #tpu.memory_space<vmem>>, vector<32x32xf32>
    %cst_53 = arith.constant dense<0.000000e+00> : vector<8x32xf32>
    %108 = tpu.matmul %106, %107, %cst_53 {dimension_numbers = #tpu.dot_dimension_numbers<[1], [0], [0], [1], [0, 0, 1, 1], [], []>} : vector<8x32xf32>, vector<32x32xf32>, vector<8x32xf32> -> vector<8x32xf32>
    %c0_54 = arith.constant 0 : index
    %c0_55 = arith.constant 0 : index
    %109 = vector.load %arg10[%c0_54, %c0_55] : memref<1x32xf32, #tpu.memory_space<vmem>>, vector<1x32xf32>
    %110 = vector.broadcast %109 : vector<1x32xf32> to vector<8x32xf32>
    %111 = arith.addf %108, %110 : vector<8x32xf32>
    %c0_56 = arith.constant 0 : index
    %c0_57 = arith.constant 0 : index
    %c0_58 = arith.constant 0 : index
    %112 = vector.load %arg11[%c0_56, %c0_57, %c0_58] : memref<1x8x32xf32, #tpu.memory_space<vmem>>, vector<1x8x32xf32>
    %113 = vector.shape_cast %112 : vector<1x8x32xf32> to vector<8x32xf32>
    %114 = vector.shape_cast %111 : vector<8x32xf32> to vector<1x8x32xf32>
    tpu.vector_store %arg11[%c0_56, %c0_57, %c0_58], %114 {strides = array<i32>} : memref<1x8x32xf32, #tpu.memory_space<vmem>>, vector<1x8x32xf32>,
    return
  }
  func.func @transform_0(%arg0: i32, %arg1: i32) -> (i32, i32, i32) {
    %c0_i32 = arith.constant 0 : i32
    %c0_i32_0 = arith.constant 0 : i32
    %c0_i32_1 = arith.constant 0 : i32
    return %arg0, %c0_i32, %c0_i32_0 : i32, i32, i32
  }
  func.func @transform_1(%arg0: i32, %arg1: i32) -> (i32, i32) {
    %c0_i32 = arith.constant 0 : i32
    %c0_i32_0 = arith.constant 0 : i32
    %c0_i32_1 = arith.constant 0 : i32
    return %c0_i32, %c0_i32_0 : i32, i32
  }
  func.func @transform_2(%arg0: i32, %arg1: i32) -> (i32, i32) {
    %c0_i32 = arith.constant 0 : i32
    %c0_i32_0 = arith.constant 0 : i32
    %c0_i32_1 = arith.constant 0 : i32
    return %c0_i32, %c0_i32_0 : i32, i32
  }
  func.func @transform_3(%arg0: i32, %arg1: i32) -> (i32, i32) {
    %c0_i32 = arith.constant 0 : i32
    %c0_i32_0 = arith.constant 0 : i32
    %c0_i32_1 = arith.constant 0 : i32
    return %c0_i32, %c0_i32_0 : i32, i32
  }
  func.func @transform_4(%arg0: i32, %arg1: i32) -> (i32, i32) {
    %c0_i32 = arith.constant 0 : i32
    %c0_i32_0 = arith.constant 0 : i32
    %c0_i32_1 = arith.constant 0 : i32
    return %c0_i32, %c0_i32_0 : i32, i32
  }
  func.func @transform_5(%arg0: i32, %arg1: i32) -> (i32, i32) {
    %c0_i32 = arith.constant 0 : i32
    %c0_i32_0 = arith.constant 0 : i32
    %c0_i32_1 = arith.constant 0 : i32
    return %c0_i32, %c0_i32_0 : i32, i32
  }
  func.func @transform_6(%arg0: i32, %arg1: i32) -> (i32, i32) {
    %c0_i32 = arith.constant 0 : i32
    %c0_i32_0 = arith.constant 0 : i32
    %c0_i32_1 = arith.constant 0 : i32
    return %c0_i32, %c0_i32_0 : i32, i32
  }
  func.func @transform_7(%arg0: i32, %arg1: i32) -> (i32, i32) {
    %c0_i32 = arith.constant 0 : i32
    %c0_i32_0 = arith.constant 0 : i32
    %c0_i32_1 = arith.constant 0 : i32
    return %c0_i32, %c0_i32_0 : i32, i32
  }
  func.func @transform_8(%arg0: i32, %arg1: i32) -> (i32, i32) {
    %c0_i32 = arith.constant 0 : i32
    %c0_i32_0 = arith.constant 0 : i32
    %c0_i32_1 = arith.constant 0 : i32
    return %c0_i32, %c0_i32_0 : i32, i32
  }
  func.func @transform_9(%arg0: i32, %arg1: i32) -> (i32, i32, i32) {
    %c0_i32 = arith.constant 0 : i32
    %c0_i32_0 = arith.constant 0 : i32
    return %arg0, %arg1, %c0_i32 : i32, i32, i32
  }
  func.func @transform_10(%arg0: i32, %arg1: i32) -> (i32, i32, i32, i32) {
    %c0_i32 = arith.constant 0 : i32
    %c0_i32_0 = arith.constant 0 : i32
    %c0_i32_1 = arith.constant 0 : i32
    return %arg0, %c0_i32, %arg1, %c0_i32_0 : i32, i32, i32, i32
  }
}

</mosaic_0001>

<llo_original>
// kernel: tpu_custom_call.1
$region0: #{tpu_custom_call.1}
  #allocation0 [shape = 'u32[]', space=smem, size = 0x4, offset = 0x4, fixed_abs, tag = 'smem constant byte address 0x4 - core index']
  #allocation1 [shape = 'u32[144,128]{1,0:T(1,128)}', space=vmem, size = 0x12000, scoped, tag = 'internal scratch']
  #allocation2 [shape = 'f32[16,32]{1,0:T(8,128)}', space=vmem, size = 0x2000, scoped, tag = 'scratch operand']
  #allocation3 [shape = 'f32[16,32]{1,0:T(8,128)}', space=vmem, size = 0x2000, scoped, tag = 'scratch operand']
  #allocation4 [shape = 'f32[8,32]{1,0:T(8,128)}', space=vmem, size = 0x1000, scoped, tag = 'scratch operand']
  %s0 = inlined_call_operand.hbm [shape: f32[2,16,32], index: 0, kind: input, shape index: {}]
  %s1 = inlined_call_operand.hbm [shape: f32[32,32], index: 1, kind: input, shape index: {}]
  %s2 = inlined_call_operand.vmem [shape: f32[1,32], index: 2, kind: input, shape index: {}]
  %s3 = inlined_call_operand.hbm [shape: f32[32,32], index: 3, kind: input, shape index: {}]
  %s4 = inlined_call_operand.vmem [shape: f32[1,32], index: 4, kind: input, shape index: {}]
  %s5 = inlined_call_operand.hbm [shape: f32[32,32], index: 5, kind: input, shape index: {}]
  %s6 = inlined_call_operand.vmem [shape: f32[1,32], index: 6, kind: input, shape index: {}]
  %s7 = inlined_call_operand.hbm [shape: f32[32,32], index: 7, kind: input, shape index: {}]
  %s8 = inlined_call_operand.vmem [shape: f32[1,32], index: 8, kind: input, shape index: {}]
  %s9 = inlined_call_operand.hbm [shape: f32[2,16,32], index: 9, kind: output, shape index: {0}]
  %s10 = inlined_call_operand.hbm [shape: f32[2,4,16,16], index: 10, kind: output, shape index: {1}]
  %11 = xla_tuple %s9, %s10
  %s12 = sld [smem:[#allocation0]]
  $region101: #{tpu_custom_call.1} parent=0
    _
  %s14 = ssub.s32 1, %s12
  %s15 = scalar_select 0, %s14, %s12
  $region1: #{tpu_custom_call.1} parent=0
    #allocation5 [shape = 'u8[16384]{0}', space=vmem, size = 0x4000, scoped, tag = 'input window, operand 0']
    #allocation6 [shape = 's32[2]{0}', space=sflag, size = 0x8, scoped, tag = 'scoped memory for tpu_custom_call.1']
    #allocation7 [shape = 's32[2]{0}', space=sflag, size = 0x8, scoped, tag = 'scoped memory for tpu_custom_call.1']
    #allocation8 [shape = 'u8[16384]{0}', space=vmem, size = 0x4000, scoped, tag = 'input window, operand 1, single buffered']
    #allocation9 [shape = 's32[1]{0}', space=sflag, size = 0x4, scoped, tag = 'scoped memory for tpu_custom_call.1']
    #allocation10 [shape = 'u8[16384]{0}', space=vmem, size = 0x4000, scoped, tag = 'input window, operand 3, single buffered']
    #allocation11 [shape = 'u8[16384]{0}', space=vmem, size = 0x4000, scoped, tag = 'input window, operand 5, single buffered']
    #allocation12 [shape = 's32[1]{0}', space=sflag, size = 0x4, scoped, tag = 'scoped memory for tpu_custom_call.1']
    #allocation13 [shape = 'u8[16384]{0}', space=vmem, size = 0x4000, scoped, tag = 'input window, operand 7, single buffered']
    #allocation14 [shape = 'u8[8192]{0}', space=vmem, size = 0x2000, scoped, tag = 'output window, operand 0']
    #allocation15 [shape = 'u8[32768]{0}', space=vmem, size = 0x8000, scoped, tag = 'output window, operand 1']
    #allocation16 [shape = 's32[2]{0}', space=sflag, size = 0x8, scoped, tag = 'scoped memory for tpu_custom_call.1']
    %16 = vsyncpa [#allocation6], 0
    %s17 = scalar_lea.sflag [#allocation6], 1
    %18 = vsyncpa %s17, 0
    %19 = vsyncpa [#allocation9], 0
    %20 = vsyncpa [#allocation12], 0
    %21 = vsyncpa [#allocation7], 0
    %s22 = scalar_lea.sflag [#allocation7], 1
    %23 = vsyncpa %s22, 0
    %24 = vsyncpa [#allocation16], 0
    %s25 = scalar_lea.sflag [#allocation16], 1
    %26 = vsyncpa %s25, 0
    loop: start=0, step=1, limit=6
    $region2: #{tpu_custom_call.1} parent=1 // loop_pre_header
      _
    $region3: #{tpu_custom_call.1} parent=1 // loop_header
      %s28 = sphi 0, %s32
      %p29 = scmp.ge.s32.totalorder %s28, 6
      %s35 = sphi 0, %s47
      %s36 = sphi 0, %s43
      %s37 = sphi 0, %s35
      %s38 = sphi 0, %s36
      %s39 = sphi 0, %s37
      %s40 = sphi 0, %s38
      %s50 = sphi 0, %s52
      %s53 = sphi 0, %s50
      %s54 = sphi 0, %s53
      %s70 = sphi 0, %s54
      %s74 = sphi 0, %s74
      %s76 = sphi 0, %s74
      %s77 = sphi 0, %s76
      %s91 = sphi 0, %s77
      %s95 = sphi 0, %s95
      %s97 = sphi 0, %s95
      %s98 = sphi 0, %s97
      %s112 = sphi 0, %s98
      %s116 = sphi 0, %s116
      %s118 = sphi 0, %s116
      %s119 = sphi 0, %s118
      %s133 = sphi 0, %s119
      %s137 = sphi 0, %s137
      %s139 = sphi 0, %s137
      %s140 = sphi 0, %s139
      %s154 = sphi 0, %s140
      %s158 = sphi 0, %s158
      %s160 = sphi 0, %s158
      %s161 = sphi 0, %s160
      %s175 = sphi 0, %s161
      %s179 = sphi 0, %s179
      %s181 = sphi 0, %s179
      %s182 = sphi 0, %s181
      %s196 = sphi 0, %s182
      %s200 = sphi 0, %s200
      %s202 = sphi 0, %s200
      %s203 = sphi 0, %s202
      %s217 = sphi 0, %s203
      %s221 = sphi 0, %s221
      %s223 = sphi 0, %s221
      %s224 = sphi 0, %s223
      %s238 = sphi 0, %s224
      %s246 = sphi 0, %s248
      %s249 = sphi 0, %s246
      %s250 = sphi 0, %s249
      %s266 = sphi 0, %s250
      %s274 = sphi 0, %s276
      %s277 = sphi 0, %s274
      %s278 = sphi 0, %s277
      %s294 = sphi 0, %s278
    $region4: #{tpu_custom_call.1} parent=1 // loop_header_branch
      %31 = sbr.rel (%p29) target = $region8
    $region5: #{tpu_custom_call.1} parent=1 // loop_body
      %s33 = ssub.s32 %s28, 1
      %s34 = ssub.s32 %s28, 2
      %s41 = sadd.s32 1, %s36
      %p42 = scmp.ge.s32.totalorder %s41, 2
      %s43 = scalar_select %p42, 0, %s41
      %s44 = sadd.s32 1, %s35
      %s45 = scalar_select %p42, %s44, %s35
      %p46 = scmp.ge.s32.totalorder %s45, 2
      %s47 = scalar_select %p46, 0, %s45
      %s48 = ssub.s32 %s35, %s47
      %p49 = scmp.eq.s32.totalorder %s48, 0
      %s51 = sadd.s32 %s50, 1
      %s52 = scalar_select %p49, %s50, %s51
      %p55 = pneg %p49
      %p56 = scmp.eq.s32.totalorder %s28, 3
      %p57 = por %p55, %p56
      %p58 = scmp.ne.s32.totalorder %s50, %s53
      %p59 = scmp.eq.s32.totalorder %s28, 0
      %p60 = por %p58, %p59
      %p61 = scmp.ne.s32.totalorder %s50, %s53
      %p62 = scmp.eq.s32.totalorder %s33, 3
      %p63 = por %p61, %p62
      %p64 = scmp.ne.s32.totalorder %s53, %s54
      %p65 = scmp.eq.s32.totalorder %s33, 0
      %p66 = por %p64, %p65
      %p67 = scmp.ne.s32.totalorder %s53, %s54
      %p68 = scmp.eq.s32.totalorder %s34, 3
      %p69 = por %p67, %p68
      %p71 = scmp.ne.s32.totalorder %s54, %s70
      %p72 = scmp.eq.s32.totalorder %s34, 0
      %p73 = por %p71, %p72
      %s75 = sadd.s32 %s74, 1
      %p78 = scmp.eq.s32.totalorder %s28, 3
      %p79 = scmp.ne.s32.totalorder %s74, %s76
      %p80 = scmp.eq.s32.totalorder %s28, 0
      %p81 = por %p79, %p80
      %p82 = scmp.ne.s32.totalorder %s74, %s76
      %p83 = scmp.eq.s32.totalorder %s33, 3
      %p84 = por %p82, %p83
      %p85 = scmp.ne.s32.totalorder %s76, %s77
      %p86 = scmp.eq.s32.totalorder %s33, 0
      %p87 = por %p85, %p86
      %p88 = scmp.ne.s32.totalorder %s76, %s77
      %p89 = scmp.eq.s32.totalorder %s34, 3
      %p90 = por %p88, %p89
      %p92 = scmp.ne.s32.totalorder %s77, %s91
      %p93 = scmp.eq.s32.totalorder %s34, 0
      %p94 = por %p92, %p93
      %s96 = sadd.s32 %s95, 1
      %p99 = scmp.eq.s32.totalorder %s28, 3
      %p100 = scmp.ne.s32.totalorder %s95, %s97
      %p101 = scmp.eq.s32.totalorder %s28, 0
      %p102 = por %p100, %p101
      %p103 = scmp.ne.s32.totalorder %s95, %s97
      %p104 = scmp.eq.s32.totalorder %s33, 3
      %p105 = por %p103, %p104
      %p106 = scmp.ne.s32.totalorder %s97, %s98
      %p107 = scmp.eq.s32.totalorder %s33, 0
      %p108 = por %p106, %p107
      %p109 = scmp.ne.s32.totalorder %s97, %s98
      %p110 = scmp.eq.s32.totalorder %s34, 3
      %p111 = por %p109, %p110
      %p113 = scmp.ne.s32.totalorder %s98, %s112
      %p114 = scmp.eq.s32.totalorder %s34, 0
      %p115 = por %p113, %p114
      %s117 = sadd.s32 %s116, 1
      %p120 = scmp.eq.s32.totalorder %s28, 3
      %p121 = scmp.ne.s32.totalorder %s116, %s118
      %p122 = scmp.eq.s32.totalorder %s28, 0
      %p123 = por %p121, %p122
      %p124 = scmp.ne.s32.totalorder %s116, %s118
      %p125 = scmp.eq.s32.totalorder %s33, 3
      %p126 = por %p124, %p125
      %p127 = scmp.ne.s32.totalorder %s118, %s119
      %p128 = scmp.eq.s32.totalorder %s33, 0
      %p129 = por %p127, %p128
      %p130 = scmp.ne.s32.totalorder %s118, %s119
      %p131 = scmp.eq.s32.totalorder %s34, 3
      %p132 = por %p130, %p131
      %p134 = scmp.ne.s32.totalorder %s119, %s133
      %p135 = scmp.eq.s32.totalorder %s34, 0
      %p136 = por %p134, %p135
      %s138 = sadd.s32 %s137, 1
      %p141 = scmp.eq.s32.totalorder %s28, 3
      %p142 = scmp.ne.s32.totalorder %s137, %s139
      %p143 = scmp.eq.s32.totalorder %s28, 0
      %p144 = por %p142, %p143
      %p145 = scmp.ne.s32.totalorder %s137, %s139
      %p146 = scmp.eq.s32.totalorder %s33, 3
      %p147 = por %p145, %p146
      %p148 = scmp.ne.s32.totalorder %s139, %s140
      %p149 = scmp.eq.s32.totalorder %s33, 0
      %p150 = por %p148, %p149
      %p151 = scmp.ne.s32.totalorder %s139, %s140
      %p152 = scmp.eq.s32.totalorder %s34, 3
      %p153 = por %p151, %p152
      %p155 = scmp.ne.s32.totalorder %s140, %s154
      %p156 = scmp.eq.s32.totalorder %s34, 0
      %p157 = por %p155, %p156
      %s159 = sadd.s32 %s158, 1
      %p162 = scmp.eq.s32.totalorder %s28, 3
      %p163 = scmp.ne.s32.totalorder %s158, %s160
      %p164 = scmp.eq.s32.totalorder %s28, 0
      %p165 = por %p163, %p164
      %p166 = scmp.ne.s32.totalorder %s158, %s160
      %p167 = scmp.eq.s32.totalorder %s33, 3
      %p168 = por %p166, %p167
      %p169 = scmp.ne.s32.totalorder %s160, %s161
      %p170 = scmp.eq.s32.totalorder %s33, 0
      %p171 = por %p169, %p170
      %p172 = scmp.ne.s32.totalorder %s160, %s161
      %p173 = scmp.eq.s32.totalorder %s34, 3
      %p174 = por %p172, %p173
      %p176 = scmp.ne.s32.totalorder %s161, %s175
      %p177 = scmp.eq.s32.totalorder %s34, 0
      %p178 = por %p176, %p177
      %s180 = sadd.s32 %s179, 1
      %p183 = scmp.eq.s32.totalorder %s28, 3
      %p184 = scmp.ne.s32.totalorder %s179, %s181
      %p185 = scmp.eq.s32.totalorder %s28, 0
      %p186 = por %p184, %p185
      %p187 = scmp.ne.s32.totalorder %s179, %s181
      %p188 = scmp.eq.s32.totalorder %s33, 3
      %p189 = por %p187, %p188
      %p190 = scmp.ne.s32.totalorder %s181, %s182
      %p191 = scmp.eq.s32.totalorder %s33, 0
      %p192 = por %p190, %p191
      %p193 = scmp.ne.s32.totalorder %s181, %s182
      %p194 = scmp.eq.s32.totalorder %s34, 3
      %p195 = por %p193, %p194
      %p197 = scmp.ne.s32.totalorder %s182, %s196
      %p198 = scmp.eq.s32.totalorder %s34, 0
      %p199 = por %p197, %p198
      %s201 = sadd.s32 %s200, 1
      %p204 = scmp.eq.s32.totalorder %s28, 3
      %p205 = scmp.ne.s32.totalorder %s200, %s202
      %p206 = scmp.eq.s32.totalorder %s28, 0
      %p207 = por %p205, %p206
      %p208 = scmp.ne.s32.totalorder %s200, %s202
      %p209 = scmp.eq.s32.totalorder %s33, 3
      %p210 = por %p208, %p209
      %p211 = scmp.ne.s32.totalorder %s202, %s203
      %p212 = scmp.eq.s32.totalorder %s33, 0
      %p213 = por %p211, %p212
      %p214 = scmp.ne.s32.totalorder %s202, %s203
      %p215 = scmp.eq.s32.totalorder %s34, 3
      %p216 = por %p214, %p215
      %p218 = scmp.ne.s32.totalorder %s203, %s217
      %p219 = scmp.eq.s32.totalorder %s34, 0
      %p220 = por %p218, %p219
      %s222 = sadd.s32 %s221, 1
      %p225 = scmp.eq.s32.totalorder %s28, 3
      %p226 = scmp.ne.s32.totalorder %s221, %s223
      %p227 = scmp.eq.s32.totalorder %s28, 0
      %p228 = por %p226, %p227
      %p229 = scmp.ne.s32.totalorder %s221, %s223
      %p230 = scmp.eq.s32.totalorder %s33, 3
      %p231 = por %p229, %p230
      %p232 = scmp.ne.s32.totalorder %s223, %s224
      %p233 = scmp.eq.s32.totalorder %s33, 0
      %p234 = por %p232, %p233
      %p235 = scmp.ne.s32.totalorder %s223, %s224
      %p236 = scmp.eq.s32.totalorder %s34, 3
      %p237 = por %p235, %p236
      %p239 = scmp.ne.s32.totalorder %s224, %s238
      %p240 = scmp.eq.s32.totalorder %s34, 0
      %p241 = por %p239, %p240
      %s242 = ssub.s32 %s35, %s47
      %s243 = ssub.s32 %s36, %s43
      %s244 = sor.u32 %s242, %s243
      %p245 = scmp.eq.s32.totalorder %s244, 0
      %s247 = sadd.s32 %s246, 1
      %s248 = scalar_select %p245, %s246, %s247
      %p251 = pneg %p245
      %p252 = scmp.eq.s32.totalorder %s28, 3
      %p253 = por %p251, %p252
      %p254 = scmp.ne.s32.totalorder %s246, %s249
      %p255 = scmp.eq.s32.totalorder %s28, 0
      %p256 = por %p254, %p255
      %p257 = scmp.ne.s32.totalorder %s246, %s249
      %p258 = scmp.eq.s32.totalorder %s33, 3
      %p259 = por %p257, %p258
      %p260 = scmp.ne.s32.totalorder %s249, %s250
      %p261 = scmp.eq.s32.totalorder %s33, 0
      %p262 = por %p260, %p261
      %p263 = scmp.ne.s32.totalorder %s249, %s250
      %p264 = scmp.eq.s32.totalorder %s34, 3
      %p265 = por %p263, %p264
      %p267 = scmp.ne.s32.totalorder %s250, %s266
      %p268 = scmp.eq.s32.totalorder %s34, 0
      %p269 = por %p267, %p268
      %s270 = ssub.s32 %s35, %s47
      %s271 = ssub.s32 %s36, %s43
      %s272 = sor.u32 %s270, %s271
      %p273 = scmp.eq.s32.totalorder %s272, 0
      %s275 = sadd.s32 %s274, 1
      %s276 = scalar_select %p273, %s274, %s275
      %p279 = pneg %p273
      %p280 = scmp.eq.s32.totalorder %s28, 3
      %p281 = por %p279, %p280
      %p282 = scmp.ne.s32.totalorder %s274, %s277
      %p283 = scmp.eq.s32.totalorder %s28, 0
      %p284 = por %p282, %p283
      %p285 = scmp.ne.s32.totalorder %s274, %s277
      %p286 = scmp.eq.s32.totalorder %s33, 3
      %p287 = por %p285, %p286
      %p288 = scmp.ne.s32.totalorder %s277, %s278
      %p289 = scmp.eq.s32.totalorder %s33, 0
      %p290 = por %p288, %p289
      %p291 = scmp.ne.s32.totalorder %s277, %s278
      %p292 = scmp.eq.s32.totalorder %s34, 3
      %p293 = por %p291, %p292
      %p295 = scmp.ne.s32.totalorder %s278, %s294
      %p296 = scmp.eq.s32.totalorder %s34, 0
      %p297 = por %p295, %p296
      %p298 = scmp.le.s32.totalorder 1, %s28
      %p299 = scmp.lt.s32.totalorder %s28, 5
      %p300 = pnand %p298, %p299
      %p301 = pneg %p300
      // Predicated region
      $region9: #{tpu_custom_call.1} parent=5 // pred_check
        _
      $region10: #{tpu_custom_call.1} parent=5 // pred_check_branch
        %303 = sbr.rel (%p300) target = $region12
      $region11: #{tpu_custom_call.1} parent=5 // pred_region
        %s304 = ssub.s32 %s28, 1
        // Predicated region
        $region13: #{tpu_custom_call.1} parent=11 // pred_check
          %p305 = pneg %p87
        $region14: #{tpu_custom_call.1} parent=11 // pred_check_branch
          %307 = sbr.rel (%p305) target = $region16
        $region15: #{tpu_custom_call.1} parent=11 // pred_region
          %s309 = ssub.s32 512, 512
          %310 = vsyncadd [#allocation9], %s309
          %s311 = sshll.u32 [#allocation8], 4
          %s312 = int_to_ptr.vmem [resolvable:$true] %s311
          %317 = dma.hbm_to_vmem [thread:$0]  %s1, 512, %s312, [#allocation9], 128, 128, 8
        $region16: #{tpu_custom_call.1} parent=11 // pred_fallthru
          _
        // Predicated region
        $region17: #{tpu_custom_call.1} parent=11 // pred_check
          %p318 = pneg %p108
        $region18: #{tpu_custom_call.1} parent=11 // pred_check_branch
          %320 = sbr.rel (%p318) target = $region20
        $region19: #{tpu_custom_call.1} parent=11 // pred_region
          _
        $region20: #{tpu_custom_call.1} parent=11 // pred_fallthru
          _
        // Predicated region
        $region21: #{tpu_custom_call.1} parent=11 // pred_check
          %p321 = pneg %p129
        $region22: #{tpu_custom_call.1} parent=11 // pred_check_branch
          %323 = sbr.rel (%p321) target = $region24
        $region23: #{tpu_custom_call.1} parent=11 // pred_region
          %s325 = ssub.s32 512, 512
          %326 = vsyncadd [#allocation9], %s325
          %s327 = sshll.u32 [#allocation10], 4
          %s328 = int_to_ptr.vmem [resolvable:$true] %s327
          %333 = dma.hbm_to_vmem [thread:$0]  %s3, 512, %s328, [#allocation9], 128, 128, 8
        $region24: #{tpu_custom_call.1} parent=11 // pred_fallthru
          _
        // Predicated region
        $region25: #{tpu_custom_call.1} parent=11 // pred_check
          %p334 = pneg %p150
        $region26: #{tpu_custom_call.1} parent=11 // pred_check_branch
          %336 = sbr.rel (%p334) target = $region28
        $region27: #{tpu_custom_call.1} parent=11 // pred_region
          _
        $region28: #{tpu_custom_call.1} parent=11 // pred_fallthru
          _
        // Predicated region
        $region29: #{tpu_custom_call.1} parent=11 // pred_check
          %p337 = pneg %p171
        $region30: #{tpu_custom_call.1} parent=11 // pred_check_branch
          %339 = sbr.rel (%p337) target = $region32
        $region31: #{tpu_custom_call.1} parent=11 // pred_region
          %s341 = ssub.s32 512, 512
          %342 = vsyncadd [#allocation12], %s341
          %s343 = sshll.u32 [#allocation11], 4
          %s344 = int_to_ptr.vmem [resolvable:$true] %s343
          %349 = dma.hbm_to_vmem [thread:$0]  %s5, 512, %s344, [#allocation12], 128, 128, 8
        $region32: #{tpu_custom_call.1} parent=11 // pred_fallthru
          _
        // Predicated region
        $region33: #{tpu_custom_call.1} parent=11 // pred_check
          %p350 = pneg %p192
        $region34: #{tpu_custom_call.1} parent=11 // pred_check_branch
          %352 = sbr.rel (%p350) target = $region36
        $region35: #{tpu_custom_call.1} parent=11 // pred_region
          _
        $region36: #{tpu_custom_call.1} parent=11 // pred_fallthru
          _
        // Predicated region
        $region37: #{tpu_custom_call.1} parent=11 // pred_check
          %p353 = pneg %p213
        $region38: #{tpu_custom_call.1} parent=11 // pred_check_branch
          %355 = sbr.rel (%p353) target = $region40
        $region39: #{tpu_custom_call.1} parent=11 // pred_region
          %s357 = ssub.s32 512, 512
          %358 = vsyncadd [#allocation12], %s357
          %s359 = sshll.u32 [#allocation13], 4
          %s360 = int_to_ptr.vmem [resolvable:$true] %s359
          %365 = dma.hbm_to_vmem [thread:$0]  %s7, 512, %s360, [#allocation12], 128, 128, 8
        $region40: #{tpu_custom_call.1} parent=11 // pred_fallthru
          _
        // Predicated region
        $region41: #{tpu_custom_call.1} parent=11 // pred_check
          %p366 = pneg %p234
        $region42: #{tpu_custom_call.1} parent=11 // pred_check_branch
          %368 = sbr.rel (%p366) target = $region44
        $region43: #{tpu_custom_call.1} parent=11 // pred_region
          _
        $region44: #{tpu_custom_call.1} parent=11 // pred_fallthru
          _
      $region12: #{tpu_custom_call.1} parent=5 // pred_fallthru
        _
      %p369 = scmp.lt.s32.totalorder %s28, 4
      // Predicated region
      $region45: #{tpu_custom_call.1} parent=5 // pred_check
        %p370 = pneg %p369
      $region46: #{tpu_custom_call.1} parent=5 // pred_check_branch
        %372 = sbr.rel (%p370) target = $region48
      $region47: #{tpu_custom_call.1} parent=5 // pred_region
        // Predicated region
        $region49: #{tpu_custom_call.1} parent=47 // pred_check
          %p373 = pneg %p60
        $region50: #{tpu_custom_call.1} parent=47 // pred_check_branch
          %375 = sbr.rel (%p373) target = $region52
        $region51: #{tpu_custom_call.1} parent=47 // pred_region
          %s376 = sand.u32 %s50, 1
          %s377 = scalar_lea.sflag [#allocation6], %s376
          %s378 = sand.u32 %s50, 1
          %s379 = smul.addr %s378, 16
          %s380 = scalar_lea.vmem [#allocation5], %s379
          %s382 = ssub.s32 256, 256
          %383 = vsyncadd %s377, %s382
          %s384 = smul.addr %s35, 2
          %s385 = smul.addr %s384, 128
          %s386 = scalar_lea.hbm %s0, %s385
          %s387 = sshll.u32 %s380, 4
          %s388 = int_to_ptr.vmem [resolvable:$true] %s387
          %393 = dma.hbm_to_vmem [thread:$0]  %s386, 256, %s388, %s377, 128, 128, 8
        $region52: #{tpu_custom_call.1} parent=47 // pred_fallthru
          _
      $region48: #{tpu_custom_call.1} parent=5 // pred_fallthru
        _
      %p394 = scmp.le.s32.totalorder 1, %s28
      %p395 = scmp.lt.s32.totalorder %s28, 5
      %p396 = pnand %p394, %p395
      %p397 = pneg %p396
      // Predicated region
      $region53: #{tpu_custom_call.1} parent=5 // pred_check
        _
      $region54: #{tpu_custom_call.1} parent=5 // pred_check_branch
        %399 = sbr.rel (%p396) target = $region56
      $region55: #{tpu_custom_call.1} parent=5 // pred_region
        %s400 = ssub.s32 %s28, 1
        %s401 = sand.u32 %s53, 1
        %s402 = scalar_lea.sflag [#allocation6], %s401
        %s403 = sand.u32 %s53, 1
        %s404 = smul.addr %s403, 16
        %s405 = scalar_lea.vmem [#allocation5], %s404
        // Predicated region
        $region57: #{tpu_custom_call.1} parent=55 // pred_check
          %p406 = pneg %p66
        $region58: #{tpu_custom_call.1} parent=55 // pred_check_branch
          %408 = sbr.rel (%p406) target = $region60
        $region59: #{tpu_custom_call.1} parent=55 // pred_region
          %409 = dma.done %s402, 256
        $region60: #{tpu_custom_call.1} parent=55 // pred_fallthru
          _
        // Predicated region
        $region61: #{tpu_custom_call.1} parent=55 // pred_check
          %p410 = pneg %p87
        $region62: #{tpu_custom_call.1} parent=55 // pred_check_branch
          %412 = sbr.rel (%p410) target = $region64
        $region63: #{tpu_custom_call.1} parent=55 // pred_region
          %413 = dma.done [#allocation9], 512
        $region64: #{tpu_custom_call.1} parent=55 // pred_fallthru
          _
        // Predicated region
        $region65: #{tpu_custom_call.1} parent=55 // pred_check
          %p414 = pneg %p129
        $region66: #{tpu_custom_call.1} parent=55 // pred_check_branch
          %416 = sbr.rel (%p414) target = $region68
        $region67: #{tpu_custom_call.1} parent=55 // pred_region
          %417 = dma.done [#allocation9], 512
        $region68: #{tpu_custom_call.1} parent=55 // pred_fallthru
          _
        // Predicated region
        $region69: #{tpu_custom_call.1} parent=55 // pred_check
          %p418 = pneg %p171
        $region70: #{tpu_custom_call.1} parent=55 // pred_check_branch
          %420 = sbr.rel (%p418) target = $region72
        $region71: #{tpu_custom_call.1} parent=55 // pred_region
          %421 = dma.done [#allocation12], 512
        $region72: #{tpu_custom_call.1} parent=55 // pred_fallthru
          _
        // Predicated region
        $region73: #{tpu_custom_call.1} parent=55 // pred_check
          %p422 = pneg %p213
        $region74: #{tpu_custom_call.1} parent=55 // pred_check_branch
          %424 = sbr.rel (%p422) target = $region76
        $region75: #{tpu_custom_call.1} parent=55 // pred_region
          %425 = dma.done [#allocation12], 512
        $region76: #{tpu_custom_call.1} parent=55 // pred_fallthru
          _
        %s426 = sand.u32 %s53, 1
        %s427 = scalar_lea.sflag [#allocation6], %s426
        %s428 = sand.u32 %s53, 1
        %s429 = smul.addr %s428, 16
        %s430 = scalar_lea.vmem [#allocation5], %s429
        %p431 = pneg %p66
        %p432 = pneg %p63
        %p433 = pneg %p87
        %p434 = pneg %p84
        %p435 = pneg %p108
        %p436 = pneg %p105
        %p437 = pneg %p129
        %p438 = pneg %p126
        %p439 = pneg %p150
        %p440 = pneg %p147
        %p441 = pneg %p171
        %p442 = pneg %p168
        %p443 = pneg %p192
        %p444 = pneg %p189
        %p445 = pneg %p213
        %p446 = pneg %p210
        %p447 = pneg %p234
        %p448 = pneg %p231
        %p449 = pneg %p262
        %p450 = pneg %p259
        %s451 = sand.u32 %s249, 1
        %s452 = scalar_lea.sflag [#allocation7], %s451
        %s453 = sand.u32 %s249, 1
        %s454 = smul.addr %s453, 8
        %s455 = scalar_lea.vmem [#allocation14], %s454
        %p456 = pneg %p290
        %p457 = pneg %p287
        %s458 = sand.u32 %s277, 1
        %s459 = scalar_lea.sflag [#allocation16], %s458
        %s460 = sand.u32 %s277, 1
        %s461 = smul.addr %s460, 32
        %s462 = scalar_lea.vmem [#allocation15], %s461
        %p463 = scmp.eq.s32.totalorder %s38, 0
        // Predicated region
        $region77: #{tpu_custom_call.1} parent=55 // pred_check
          %p464 = pneg %p463
        $region78: #{tpu_custom_call.1} parent=55 // pred_check_branch
          %466 = sbr.rel (%p464) target = $region80
        $region79: #{tpu_custom_call.1} parent=55 // pred_region
          %v467 = vld [vmem:[%s405] sm:$0xff]
          %v468 = vld [vmem:[%s405 + $0x8] sm:$0xff]
          %v469 = vld [vmem:[#allocation10] sm:$0xff]
          %v470 = vld [vmem:[#allocation10 + $0x8] sm:$0xff]
          %v471 = vld [vmem:[#allocation10 + $0x10] sm:$0xff]
          %v472 = vld [vmem:[#allocation10 + $0x18] sm:$0xff]
          %v473 = vld [vmem:[%s4] sm:$0x1]
          %v475 = vlaneseq
          %v476 = vshrl.u32 %v475, 7
          %v477 = vsub.s32 0, %v476
          %v478 = vrot.slane %v473, %v477
          %vm480 = vcmask 261120
          %v482 = vsel %vm480, %v467, 0
          %v485 = vsel %vm480, %v468, 0
          %487 = vmatprep.subr.mxu0 0.0
          %488 = vmatpush1.msra.mxu0 0.0
          %489 = vmatprep.subr.mxu0 0.0
          %490 = vmatpush1.msra.mxu0 0.0
          %491 = vmatprep.subr.mxu0 0.0
          %492 = vmatpush1.msra.mxu0 0.0
          %493 = vmatprep.subr.mxu0 0.0
          %494 = vmatpush1.msra.mxu0 0.0
          %495 = vmatprep.subr.mxu0 0.0
          %496 = vmatpush1.msra.mxu0 0.0
          %497 = vmatprep.subr.mxu0 0.0
          %498 = vmatpush1.msra.mxu0 0.0
          %499 = vmatprep.subr.mxu0 0.0
          %500 = vmatpush1.msra.mxu0 0.0
          %501 = vmatprep.subr.mxu0 0.0
          %502 = vmatpush1.msra.mxu0 0.0
          %503 = vmatprep.subr.mxu0 0.0
          %504 = vmatpush1.msra.mxu0 0.0
          %505 = vmatprep.subr.mxu0 0.0
          %506 = vmatpush1.msra.mxu0 0.0
          %507 = vmatprep.subr.mxu0 0.0
          %508 = vmatpush1.msra.mxu0 0.0
          %509 = vmatprep.subr.mxu0 0.0
          %510 = vmatpush1.msra.mxu0 0.0
          %511 = vmatprep.subr.mxu0 0.0
          %512 = vmatpush1.msra.mxu0 %v472
          %513 = vmatprep.subr.mxu0 0.0
          %514 = vmatpush1.msra.mxu0 %v471
          %515 = vmatprep.subr.mxu0 0.0
          %516 = vmatpush1.msra.mxu0 %v470
          %517 = vmatprep.subr.mxu0 0.0
          %518 = vmatpush1.msra.mxu0 %v469
          %519 = vmatprep.subr.mxu0 0.0
          %520 = vmatpush2.msra.mxu0 0.0
          %521 = vmatprep.subr.mxu0 0.0
          %522 = vmatpush2.msra.mxu0 0.0
          %523 = vmatprep.subr.mxu0 0.0
          %524 = vmatpush2.msra.mxu0 0.0
          %525 = vmatprep.subr.mxu0 0.0
          %526 = vmatpush2.msra.mxu0 0.0
          %527 = vmatprep.subr.mxu0 0.0
          %528 = vmatpush2.msra.mxu0 0.0
          %529 = vmatprep.subr.mxu0 0.0
          %530 = vmatpush2.msra.mxu0 0.0
          %531 = vmatprep.subr.mxu0 0.0
          %532 = vmatpush2.msra.mxu0 0.0
          %533 = vmatprep.subr.mxu0 0.0
          %534 = vmatpush2.msra.mxu0 0.0
          %535 = vmatprep.subr.mxu0 0.0
          %536 = vmatpush2.msra.mxu0 0.0
          %537 = vmatprep.subr.mxu0 0.0
          %538 = vmatpush2.msra.mxu0 0.0
          %539 = vmatprep.subr.mxu0 0.0
          %540 = vmatpush2.msra.mxu0 0.0
          %541 = vmatprep.subr.mxu0 0.0
          %542 = vmatpush2.msra.mxu0 0.0
          %543 = vmatprep.subr.mxu0 0.0
          %544 = vmatpush2.msra.mxu0 0.0
          %545 = vmatprep.subr.mxu0 0.0
          %546 = vmatpush2.msra.mxu0 0.0
          %547 = vmatprep.subr.mxu0 0.0
          %548 = vmatpush2.msra.mxu0 0.0
          %549 = vmatprep.subr.mxu0 0.0
          %550 = vmatpush2.msra.mxu0 0.0
          %551 = vmatprep.mubr.f32.mxu0 0.0
          %552 = vmatmul.mubr.f32.gmra.mxu0 %v482
          %v553 = vpop.f32.mrf.mxu0
          %v554 = vadd.f32 %v478, %v553
          %v555 = vpop.f32.mrf.mxu0
          %556 = vmatprep.mubr.f32.mxu0 0.0
          %557 = vmatmul.mubr.f32.gmra.mxu0 %v485
          %v558 = vpop.f32.mrf.mxu0
          %v559 = vadd.f32 %v478, %v558
          %v560 = vpop.f32.mrf.mxu0
          %561 = vdwg.mxu0
          %v562 = vld [vmem:[#allocation11] sm:$0xff]
          %v563 = vld [vmem:[#allocation11 + $0x8] sm:$0xff]
          %v564 = vld [vmem:[#allocation11 + $0x10] sm:$0xff]
          %v565 = vld [vmem:[#allocation11 + $0x18] sm:$0xff]
          %v566 = vld [vmem:[%s6] sm:$0x1]
          %v568 = vlaneseq
          %v569 = vshrl.u32 %v568, 7
          %v570 = vsub.s32 0, %v569
          %v571 = vrot.slane %v566, %v570
          %573 = vmatprep.subr.mxu0 0.0
          %574 = vmatpush1.msra.mxu0 0.0
          %575 = vmatprep.subr.mxu0 0.0
          %576 = vmatpush1.msra.mxu0 0.0
          %577 = vmatprep.subr.mxu0 0.0
          %578 = vmatpush1.msra.mxu0 0.0
          %579 = vmatprep.subr.mxu0 0.0
          %580 = vmatpush1.msra.mxu0 0.0
          %581 = vmatprep.subr.mxu0 0.0
          %582 = vmatpush1.msra.mxu0 0.0
          %583 = vmatprep.subr.mxu0 0.0
          %584 = vmatpush1.msra.mxu0 0.0
          %585 = vmatprep.subr.mxu0 0.0
          %586 = vmatpush1.msra.mxu0 0.0
          %587 = vmatprep.subr.mxu0 0.0
          %588 = vmatpush1.msra.mxu0 0.0
          %589 = vmatprep.subr.mxu0 0.0
          %590 = vmatpush1.msra.mxu0 0.0
          %591 = vmatprep.subr.mxu0 0.0
          %592 = vmatpush1.msra.mxu0 0.0
          %593 = vmatprep.subr.mxu0 0.0
          %594 = vmatpush1.msra.mxu0 0.0
          %595 = vmatprep.subr.mxu0 0.0
          %596 = vmatpush1.msra.mxu0 0.0
          %597 = vmatprep.subr.mxu0 0.0
          %598 = vmatpush1.msra.mxu0 %v565
          %599 = vmatprep.subr.mxu0 0.0
          %600 = vmatpush1.msra.mxu0 %v564
          %601 = vmatprep.subr.mxu0 0.0
          %602 = vmatpush1.msra.mxu0 %v563
          %603 = vmatprep.subr.mxu0 0.0
          %604 = vmatpush1.msra.mxu0 %v562
          %605 = vmatprep.subr.mxu0 0.0
          %606 = vmatpush2.msra.mxu0 0.0
          %607 = vmatprep.subr.mxu0 0.0
          %608 = vmatpush2.msra.mxu0 0.0
          %609 = vmatprep.subr.mxu0 0.0
          %610 = vmatpush2.msra.mxu0 0.0
          %611 = vmatprep.subr.mxu0 0.0
          %612 = vmatpush2.msra.mxu0 0.0
          %613 = vmatprep.subr.mxu0 0.0
          %614 = vmatpush2.msra.mxu0 0.0
          %615 = vmatprep.subr.mxu0 0.0
          %616 = vmatpush2.msra.mxu0 0.0
          %617 = vmatprep.subr.mxu0 0.0
          %618 = vmatpush2.msra.mxu0 0.0
          %619 = vmatprep.subr.mxu0 0.0
          %620 = vmatpush2.msra.mxu0 0.0
          %621 = vmatprep.subr.mxu0 0.0
          %622 = vmatpush2.msra.mxu0 0.0
          %623 = vmatprep.subr.mxu0 0.0
          %624 = vmatpush2.msra.mxu0 0.0
          %625 = vmatprep.subr.mxu0 0.0
          %626 = vmatpush2.msra.mxu0 0.0
          %627 = vmatprep.subr.mxu0 0.0
          %628 = vmatpush2.msra.mxu0 0.0
          %629 = vmatprep.subr.mxu0 0.0
          %630 = vmatpush2.msra.mxu0 0.0
          %631 = vmatprep.subr.mxu0 0.0
          %632 = vmatpush2.msra.mxu0 0.0
          %633 = vmatprep.subr.mxu0 0.0
          %634 = vmatpush2.msra.mxu0 0.0
          %635 = vmatprep.subr.mxu0 0.0
          %636 = vmatpush2.msra.mxu0 0.0
          %637 = vmatprep.mubr.f32.mxu0 0.0
          %638 = vmatmul.mubr.f32.gmra.mxu0 %v482
          %v639 = vpop.f32.mrf.mxu0
          %v640 = vadd.f32 %v571, %v639
          %v641 = vpop.f32.mrf.mxu0
          %642 = vmatprep.mubr.f32.mxu0 0.0
          %643 = vmatmul.mubr.f32.gmra.mxu0 %v485
          %v644 = vpop.f32.mrf.mxu0
          %v645 = vadd.f32 %v571, %v644
          %v646 = vpop.f32.mrf.mxu0
          %647 = vdwg.mxu0
          %648 = vst.msk [vmem:[#allocation2] sm:$0xff] %vm480, %v554
          %649 = vst.msk [vmem:[#allocation2 + $0x8] sm:$0xff] %vm480, %v559
          %650 = vst.msk [vmem:[#allocation3] sm:$0xff] %vm480, %v640
          %651 = vst.msk [vmem:[#allocation3 + $0x8] sm:$0xff] %vm480, %v645
        $region80: #{tpu_custom_call.1} parent=55 // pred_fallthru
          _
        %s652 = smul.u32 %s38, 8
        %s653 = scalar_lea.vmem %s405, %s652 [#allocation5]
        %v654 = vld [vmem:[%s653] sm:$0xff]
        %v655 = vld [vmem:[#allocation8] sm:$0xff]
        %v656 = vld [vmem:[#allocation8 + $0x8] sm:$0xff]
        %v657 = vld [vmem:[#allocation8 + $0x10] sm:$0xff]
        %v658 = vld [vmem:[#allocation8 + $0x18] sm:$0xff]
        %v659 = vld [vmem:[%s2] sm:$0x1]
        %v661 = vlaneseq
        %v662 = vshrl.u32 %v661, 7
        %v663 = vsub.s32 0, %v662
        %v664 = vrot.slane %v659, %v663
        %vm666 = vcmask 261120
        %v668 = vsel %vm666, %v654, 0
        %670 = vmatprep.subr.mxu0 0.0
        %671 = vmatpush1.msra.mxu0 0.0
        %672 = vmatprep.subr.mxu0 0.0
        %673 = vmatpush1.msra.mxu0 0.0
        %674 = vmatprep.subr.mxu0 0.0
        %675 = vmatpush1.msra.mxu0 0.0
        %676 = vmatprep.subr.mxu0 0.0
        %677 = vmatpush1.msra.mxu0 0.0
        %678 = vmatprep.subr.mxu0 0.0
        %679 = vmatpush1.msra.mxu0 0.0
        %680 = vmatprep.subr.mxu0 0.0
        %681 = vmatpush1.msra.mxu0 0.0
        %682 = vmatprep.subr.mxu0 0.0
        %683 = vmatpush1.msra.mxu0 0.0
        %684 = vmatprep.subr.mxu0 0.0
        %685 = vmatpush1.msra.mxu0 0.0
        %686 = vmatprep.subr.mxu0 0.0
        %687 = vmatpush1.msra.mxu0 0.0
        %688 = vmatprep.subr.mxu0 0.0
        %689 = vmatpush1.msra.mxu0 0.0
        %690 = vmatprep.subr.mxu0 0.0
        %691 = vmatpush1.msra.mxu0 0.0
        %692 = vmatprep.subr.mxu0 0.0
        %693 = vmatpush1.msra.mxu0 0.0
        %694 = vmatprep.subr.mxu0 0.0
        %695 = vmatpush1.msra.mxu0 %v658
        %696 = vmatprep.subr.mxu0 0.0
        %697 = vmatpush1.msra.mxu0 %v657
        %698 = vmatprep.subr.mxu0 0.0
        %699 = vmatpush1.msra.mxu0 %v656
        %700 = vmatprep.subr.mxu0 0.0
        %701 = vmatpush1.msra.mxu0 %v655
        %702 = vmatprep.subr.mxu0 0.0
        %703 = vmatpush2.msra.mxu0 0.0
        %704 = vmatprep.subr.mxu0 0.0
        %705 = vmatpush2.msra.mxu0 0.0
        %706 = vmatprep.subr.mxu0 0.0
        %707 = vmatpush2.msra.mxu0 0.0
        %708 = vmatprep.subr.mxu0 0.0
        %709 = vmatpush2.msra.mxu0 0.0
        %710 = vmatprep.subr.mxu0 0.0
        %711 = vmatpush2.msra.mxu0 0.0
        %712 = vmatprep.subr.mxu0 0.0
        %713 = vmatpush2.msra.mxu0 0.0
        %714 = vmatprep.subr.mxu0 0.0
        %715 = vmatpush2.msra.mxu0 0.0
        %716 = vmatprep.subr.mxu0 0.0
        %717 = vmatpush2.msra.mxu0 0.0
        %718 = vmatprep.subr.mxu0 0.0
        %719 = vmatpush2.msra.mxu0 0.0
        %720 = vmatprep.subr.mxu0 0.0
        %721 = vmatpush2.msra.mxu0 0.0
        %722 = vmatprep.subr.mxu0 0.0
        %723 = vmatpush2.msra.mxu0 0.0
        %724 = vmatprep.subr.mxu0 0.0
        %725 = vmatpush2.msra.mxu0 0.0
        %726 = vmatprep.subr.mxu0 0.0
        %727 = vmatpush2.msra.mxu0 0.0
        %728 = vmatprep.subr.mxu0 0.0
        %729 = vmatpush2.msra.mxu0 0.0
        %730 = vmatprep.subr.mxu0 0.0
        %731 = vmatpush2.msra.mxu0 0.0
        %732 = vmatprep.subr.mxu0 0.0
        %733 = vmatpush2.msra.mxu0 0.0
        %734 = vmatprep.mubr.f32.mxu0 0.0
        %735 = vmatmul.mubr.f32.gmra.mxu0 %v668
        %v736 = vpop.f32.mrf.mxu0
        %v737 = vadd.f32 %v664, %v736
        %v738 = vpop.f32.mrf.mxu0
        %739 = vdwg.mxu0
        %v740 = vmul.f32 %v737, 0.35355338
        %v741 = vld [vmem:[#allocation2] sm:$0xff]
        %v742 = vld [vmem:[#allocation2 + $0x8] sm:$0xff]
        %v743 = vld [vmem:[#allocation3] sm:$0xff]
        %v744 = vld [vmem:[#allocation3 + $0x8] sm:$0xff]
        %v745 = vlaneseq
        %v746 = vshrl.u32 %v745, 7
        %v747 = vstv %s652
        %v748 = vadd.s32 %v747, %v746
        %v749 = vlaneseq
        %v750 = vand.u32 %v749, 127
        %vm751 = vcmp.le.s32.totalorder %v750, %v748
        %vm752 = vcmask 64512
        %v754 = vsel %vm752, %v740, 0
        %v757 = vsel %vm752, %v741, 0
        %v760 = vsel %vm752, %v742, 0
        %762 = vmatprep.subr.mxu0 0.0
        %763 = vmatpush1.xpose.msra.mxu0 0.0
        %764 = vmatprep.subr.mxu0 0.0
        %765 = vmatpush1.xpose.msra.mxu0 0.0
        %766 = vmatprep.subr.mxu0 0.0
        %767 = vmatpush1.xpose.msra.mxu0 0.0
        %768 = vmatprep.subr.mxu0 0.0
        %769 = vmatpush1.xpose.msra.mxu0 0.0
        %770 = vmatprep.subr.mxu0 0.0
        %771 = vmatpush1.xpose.msra.mxu0 0.0
        %772 = vmatprep.subr.mxu0 0.0
        %773 = vmatpush1.xpose.msra.mxu0 0.0
        %774 = vmatprep.subr.mxu0 0.0
        %775 = vmatpush1.xpose.msra.mxu0 0.0
        %776 = vmatprep.subr.mxu0 0.0
        %777 = vmatpush1.xpose.msra.mxu0 0.0
        %778 = vmatprep.subr.mxu0 0.0
        %779 = vmatpush1.xpose.msra.mxu0 0.0
        %780 = vmatprep.subr.mxu0 0.0
        %781 = vmatpush1.xpose.msra.mxu0 0.0
        %782 = vmatprep.subr.mxu0 0.0
        %783 = vmatpush1.xpose.msra.mxu0 0.0
        %784 = vmatprep.subr.mxu0 0.0
        %785 = vmatpush1.xpose.msra.mxu0 0.0
        %786 = vmatprep.subr.mxu0 0.0
        %787 = vmatpush1.xpose.msra.mxu0 0.0
        %788 = vmatprep.subr.mxu0 0.0
        %789 = vmatpush1.xpose.msra.mxu0 0.0
        %790 = vmatprep.subr.mxu0 0.0
        %791 = vmatpush1.xpose.msra.mxu0 %v760
        %792 = vmatprep.subr.mxu0 0.0
        %793 = vmatpush1.xpose.msra.mxu0 %v757
        %794 = vmatprep.subr.mxu0 0.0
        %795 = vmatpush2.xpose.msra.mxu0 0.0
        %796 = vmatprep.subr.mxu0 0.0
        %797 = vmatpush2.xpose.msra.mxu0 0.0
        %798 = vmatprep.subr.mxu0 0.0
        %799 = vmatpush2.xpose.msra.mxu0 0.0
        %800 = vmatprep.subr.mxu0 0.0
        %801 = vmatpush2.xpose.msra.mxu0 0.0
        %802 = vmatprep.subr.mxu0 0.0
        %803 = vmatpush2.xpose.msra.mxu0 0.0
        %804 = vmatprep.subr.mxu0 0.0
        %805 = vmatpush2.xpose.msra.mxu0 0.0
        %806 = vmatprep.subr.mxu0 0.0
        %807 = vmatpush2.xpose.msra.mxu0 0.0
        %808 = vmatprep.subr.mxu0 0.0
        %809 = vmatpush2.xpose.msra.mxu0 0.0
        %810 = vmatprep.subr.mxu0 0.0
        %811 = vmatpush2.xpose.msra.mxu0 0.0
        %812 = vmatprep.subr.mxu0 0.0
        %813 = vmatpush2.xpose.msra.mxu0 0.0
        %814 = vmatprep.subr.mxu0 0.0
        %815 = vmatpush2.xpose.msra.mxu0 0.0
        %816 = vmatprep.subr.mxu0 0.0
        %817 = vmatpush2.xpose.msra.mxu0 0.0
        %818 = vmatprep.subr.mxu0 0.0
        %819 = vmatpush2.xpose.msra.mxu0 0.0
        %820 = vmatprep.subr.mxu0 0.0
        %821 = vmatpush2.xpose.msra.mxu0 0.0
        %822 = vmatprep.subr.mxu0 0.0
        %823 = vmatpush2.xpose.msra.mxu0 0.0
        %824 = vmatprep.subr.mxu0 0.0
        %825 = vmatpush2.xpose.msra.mxu0 0.0
        %826 = vmatprep.mubr.f32.mxu0 0.0
        %827 = vmatmul.mubr.f32.gmra.mxu0 %v754
        %v828 = vpop.f32.mrf.mxu0
        %v829 = vadd.f32 0.0, %v828
        %v830 = vpop.f32.mrf.mxu0
        %831 = vdwg.mxu0
        %v832 = vsel %vm751, %v829, -inf
        %vm833 = vcmask 130048
        %v834 = vsel %vm833, %v832, -inf
        %835 = vmax.xlane.f32.xlu0 %v834
        %v836 = vpop.xlane.xlu0 %835
        %v837 = vsub.f32 %v832, %v836
        %v838 = vmul.f32 %v837, 1.442695
        %v839 = vpow.pop %v838
        %v840 = vsel %vm833, %v839, 0.0
        %841 = vadd.xlane.f32.xlu0 %v840
        %v842 = vpop.xlane.xlu0 %841
        %v843 = vrcp.pop %v842
        %v844 = vmul.f32 %v839, %v843
        %845 = vst.msk [vmem:[%s462] sm:$0xff] %vm833, %v844
        %v847 = vsel %vm833, %v844, 0
        %849 = vmatprep.subr.mxu0 0.0
        %850 = vmatpush1.msra.mxu0 0.0
        %851 = vmatprep.subr.mxu0 0.0
        %852 = vmatpush1.msra.mxu0 0.0
        %853 = vmatprep.subr.mxu0 0.0
        %854 = vmatpush1.msra.mxu0 0.0
        %855 = vmatprep.subr.mxu0 0.0
        %856 = vmatpush1.msra.mxu0 0.0
        %857 = vmatprep.subr.mxu0 0.0
        %858 = vmatpush1.msra.mxu0 0.0
        %859 = vmatprep.subr.mxu0 0.0
        %860 = vmatpush1.msra.mxu0 0.0
        %861 = vmatprep.subr.mxu0 0.0
        %862 = vmatpush1.msra.mxu0 0.0
        %863 = vmatprep.subr.mxu0 0.0
        %864 = vmatpush1.msra.mxu0 0.0
        %865 = vmatprep.subr.mxu0 0.0
        %866 = vmatpush1.msra.mxu0 0.0
        %867 = vmatprep.subr.mxu0 0.0
        %868 = vmatpush1.msra.mxu0 0.0
        %869 = vmatprep.subr.mxu0 0.0
        %870 = vmatpush1.msra.mxu0 0.0
        %871 = vmatprep.subr.mxu0 0.0
        %872 = vmatpush1.msra.mxu0 0.0
        %873 = vmatprep.subr.mxu0 0.0
        %874 = vmatpush1.msra.mxu0 0.0
        %875 = vmatprep.subr.mxu0 0.0
        %876 = vmatpush1.msra.mxu0 0.0
        %877 = vmatprep.subr.mxu0 0.0
        %878 = vmatpush1.msra.mxu0 %v744
        %879 = vmatprep.subr.mxu0 0.0
        %880 = vmatpush1.msra.mxu0 %v743
        %881 = vmatprep.subr.mxu0 0.0
        %882 = vmatpush2.msra.mxu0 0.0
        %883 = vmatprep.subr.mxu0 0.0
        %884 = vmatpush2.msra.mxu0 0.0
        %885 = vmatprep.subr.mxu0 0.0
        %886 = vmatpush2.msra.mxu0 0.0
        %887 = vmatprep.subr.mxu0 0.0
        %888 = vmatpush2.msra.mxu0 0.0
        %889 = vmatprep.subr.mxu0 0.0
        %890 = vmatpush2.msra.mxu0 0.0
        %891 = vmatprep.subr.mxu0 0.0
        %892 = vmatpush2.msra.mxu0 0.0
        %893 = vmatprep.subr.mxu0 0.0
        %894 = vmatpush2.msra.mxu0 0.0
        %895 = vmatprep.subr.mxu0 0.0
        %896 = vmatpush2.msra.mxu0 0.0
        %897 = vmatprep.subr.mxu0 0.0
        %898 = vmatpush2.msra.mxu0 0.0
        %899 = vmatprep.subr.mxu0 0.0
        %900 = vmatpush2.msra.mxu0 0.0
        %901 = vmatprep.subr.mxu0 0.0
        %902 = vmatpush2.msra.mxu0 0.0
        %903 = vmatprep.subr.mxu0 0.0
        %904 = vmatpush2.msra.mxu0 0.0
        %905 = vmatprep.subr.mxu0 0.0
        %906 = vmatpush2.msra.mxu0 0.0
        %907 = vmatprep.subr.mxu0 0.0
        %908 = vmatpush2.msra.mxu0 0.0
        %909 = vmatprep.subr.mxu0 0.0
        %910 = vmatpush2.msra.mxu0 0.0
        %911 = vmatprep.subr.mxu0 0.0
        %912 = vmatpush2.msra.mxu0 0.0
        %913 = vmatprep.mubr.f32.mxu0 0.0
        %914 = vmatmul.mubr.f32.gmra.mxu0 %v847
        %v915 = vpop.f32.mrf.mxu0
        %v916 = vadd.f32 0.0, %v915
        %v917 = vpop.f32.mrf.mxu0
        %918 = vdwg.mxu0
        %919 = vst.msk [vmem:[#allocation4] sm:$0xff] %vm752, %v916
        %920 = vrot.lane.b32.xlu0 %v740, 120
        %v921 = vpop.permute.xlu0 %920
        %922 = vrot.lane.b32.xlu0 %v741, 120
        %v923 = vpop.permute.xlu0 %922
        %924 = vrot.lane.b32.xlu0 %v742, 120
        %v925 = vpop.permute.xlu0 %924
        %v926 = vsel %vm752, %v921, 0
        %v928 = vsel %vm752, %v923, 0
        %v930 = vsel %vm752, %v925, 0
        %932 = vmatprep.subr.mxu0 0.0
        %933 = vmatpush1.xpose.msra.mxu0 0.0
        %934 = vmatprep.subr.mxu0 0.0
        %935 = vmatpush1.xpose.msra.mxu0 0.0
        %936 = vmatprep.subr.mxu0 0.0
        %937 = vmatpush1.xpose.msra.mxu0 0.0
        %938 = vmatprep.subr.mxu0 0.0
        %939 = vmatpush1.xpose.msra.mxu0 0.0
        %940 = vmatprep.subr.mxu0 0.0
        %941 = vmatpush1.xpose.msra.mxu0 0.0
        %942 = vmatprep.subr.mxu0 0.0
        %943 = vmatpush1.xpose.msra.mxu0 0.0
        %944 = vmatprep.subr.mxu0 0.0
        %945 = vmatpush1.xpose.msra.mxu0 0.0
        %946 = vmatprep.subr.mxu0 0.0
        %947 = vmatpush1.xpose.msra.mxu0 0.0
        %948 = vmatprep.subr.mxu0 0.0
        %949 = vmatpush1.xpose.msra.mxu0 0.0
        %950 = vmatprep.subr.mxu0 0.0
        %951 = vmatpush1.xpose.msra.mxu0 0.0
        %952 = vmatprep.subr.mxu0 0.0
        %953 = vmatpush1.xpose.msra.mxu0 0.0
        %954 = vmatprep.subr.mxu0 0.0
        %955 = vmatpush1.xpose.msra.mxu0 0.0
        %956 = vmatprep.subr.mxu0 0.0
        %957 = vmatpush1.xpose.msra.mxu0 0.0
        %958 = vmatprep.subr.mxu0 0.0
        %959 = vmatpush1.xpose.msra.mxu0 0.0
        %960 = vmatprep.subr.mxu0 0.0
        %961 = vmatpush1.xpose.msra.mxu0 %v930
        %962 = vmatprep.subr.mxu0 0.0
        %963 = vmatpush1.xpose.msra.mxu0 %v928
        %964 = vmatprep.subr.mxu0 0.0
        %965 = vmatpush2.xpose.msra.mxu0 0.0
        %966 = vmatprep.subr.mxu0 0.0
        %967 = vmatpush2.xpose.msra.mxu0 0.0
        %968 = vmatprep.subr.mxu0 0.0
        %969 = vmatpush2.xpose.msra.mxu0 0.0
        %970 = vmatprep.subr.mxu0 0.0
        %971 = vmatpush2.xpose.msra.mxu0 0.0
        %972 = vmatprep.subr.mxu0 0.0
        %973 = vmatpush2.xpose.msra.mxu0 0.0
        %974 = vmatprep.subr.mxu0 0.0
        %975 = vmatpush2.xpose.msra.mxu0 0.0
        %976 = vmatprep.subr.mxu0 0.0
        %977 = vmatpush2.xpose.msra.mxu0 0.0
        %978 = vmatprep.subr.mxu0 0.0
        %979 = vmatpush2.xpose.msra.mxu0 0.0
        %980 = vmatprep.subr.mxu0 0.0
        %981 = vmatpush2.xpose.msra.mxu0 0.0
        %982 = vmatprep.subr.mxu0 0.0
        %983 = vmatpush2.xpose.msra.mxu0 0.0
        %984 = vmatprep.subr.mxu0 0.0
        %985 = vmatpush2.xpose.msra.mxu0 0.0
        %986 = vmatprep.subr.mxu0 0.0
        %987 = vmatpush2.xpose.msra.mxu0 0.0
        %988 = vmatprep.subr.mxu0 0.0
        %989 = vmatpush2.xpose.msra.mxu0 0.0
        %990 = vmatprep.subr.mxu0 0.0
        %991 = vmatpush2.xpose.msra.mxu0 0.0
        %992 = vmatprep.subr.mxu0 0.0
        %993 = vmatpush2.xpose.msra.mxu0 0.0
        %994 = vmatprep.subr.mxu0 0.0
        %995 = vmatpush2.xpose.msra.mxu0 0.0
        %996 = vmatprep.mubr.f32.mxu0 0.0
        %997 = vmatmul.mubr.f32.gmra.mxu0 %v926
        %v998 = vpop.f32.mrf.mxu0
        %v999 = vadd.f32 0.0, %v998
        %v1000 = vpop.f32.mrf.mxu0
        %1001 = vdwg.mxu0
        %v1002 = vsel %vm751, %v999, -inf
        %v1003 = vsel %vm833, %v1002, -inf
        %1004 = vmax.xlane.f32.xlu0 %v1003
        %v1005 = vpop.xlane.xlu0 %1004
        %v1006 = vsub.f32 %v1002, %v1005
        %v1007 = vmul.f32 %v1006, 1.442695
        %v1008 = vpow.pop %v1007
        %v1009 = vsel %vm833, %v1008, 0.0
        %1010 = vadd.xlane.f32.xlu0 %v1009
        %v1011 = vpop.xlane.xlu0 %1010
        %v1012 = vrcp.pop %v1011
        %v1013 = vmul.f32 %v1008, %v1012
        %s1014 = scalar_lea.vmem %s462, 8 [#allocation15]
        %1015 = vst.msk [vmem:[%s1014] sm:$0xff] %vm833, %v1013
        %1018 = vrot.lane.b32.xlu0 %v743, 120
        %v1019 = vpop.permute.xlu0 %1018
        %1020 = vrot.lane.b32.xlu0 %v744, 120
        %v1021 = vpop.permute.xlu0 %1020
        %v1025 = vsel %vm833, %v1013, 0
        %1027 = vmatprep.subr.mxu0 0.0
        %1028 = vmatpush1.msra.mxu0 0.0
        %1029 = vmatprep.subr.mxu0 0.0
        %1030 = vmatpush1.msra.mxu0 0.0
        %1031 = vmatprep.subr.mxu0 0.0
        %1032 = vmatpush1.msra.mxu0 0.0
        %1033 = vmatprep.subr.mxu0 0.0
        %1034 = vmatpush1.msra.mxu0 0.0
        %1035 = vmatprep.subr.mxu0 0.0
        %1036 = vmatpush1.msra.mxu0 0.0
        %1037 = vmatprep.subr.mxu0 0.0
        %1038 = vmatpush1.msra.mxu0 0.0
        %1039 = vmatprep.subr.mxu0 0.0
        %1040 = vmatpush1.msra.mxu0 0.0
        %1041 = vmatprep.subr.mxu0 0.0
        %1042 = vmatpush1.msra.mxu0 0.0
        %1043 = vmatprep.subr.mxu0 0.0
        %1044 = vmatpush1.msra.mxu0 0.0
        %1045 = vmatprep.subr.mxu0 0.0
        %1046 = vmatpush1.msra.mxu0 0.0
        %1047 = vmatprep.subr.mxu0 0.0
        %1048 = vmatpush1.msra.mxu0 0.0
        %1049 = vmatprep.subr.mxu0 0.0
        %1050 = vmatpush1.msra.mxu0 0.0
        %1051 = vmatprep.subr.mxu0 0.0
        %1052 = vmatpush1.msra.mxu0 0.0
        %1053 = vmatprep.subr.mxu0 0.0
        %1054 = vmatpush1.msra.mxu0 0.0
        %1055 = vmatprep.subr.mxu0 0.0
        %1056 = vmatpush1.msra.mxu0 %v1021
        %1057 = vmatprep.subr.mxu0 0.0
        %1058 = vmatpush1.msra.mxu0 %v1019
        %1059 = vmatprep.subr.mxu0 0.0
        %1060 = vmatpush2.msra.mxu0 0.0
        %1061 = vmatprep.subr.mxu0 0.0
        %1062 = vmatpush2.msra.mxu0 0.0
        %1063 = vmatprep.subr.mxu0 0.0
        %1064 = vmatpush2.msra.mxu0 0.0
        %1065 = vmatprep.subr.mxu0 0.0
        %1066 = vmatpush2.msra.mxu0 0.0
        %1067 = vmatprep.subr.mxu0 0.0
        %1068 = vmatpush2.msra.mxu0 0.0
        %1069 = vmatprep.subr.mxu0 0.0
        %1070 = vmatpush2.msra.mxu0 0.0
        %1071 = vmatprep.subr.mxu0 0.0
        %1072 = vmatpush2.msra.mxu0 0.0
        %1073 = vmatprep.subr.mxu0 0.0
        %1074 = vmatpush2.msra.mxu0 0.0
        %1075 = vmatprep.subr.mxu0 0.0
        %1076 = vmatpush2.msra.mxu0 0.0
        %1077 = vmatprep.subr.mxu0 0.0
        %1078 = vmatpush2.msra.mxu0 0.0
        %1079 = vmatprep.subr.mxu0 0.0
        %1080 = vmatpush2.msra.mxu0 0.0
        %1081 = vmatprep.subr.mxu0 0.0
        %1082 = vmatpush2.msra.mxu0 0.0
        %1083 = vmatprep.subr.mxu0 0.0
        %1084 = vmatpush2.msra.mxu0 0.0
        %1085 = vmatprep.subr.mxu0 0.0
        %1086 = vmatpush2.msra.mxu0 0.0
        %1087 = vmatprep.subr.mxu0 0.0
        %1088 = vmatpush2.msra.mxu0 0.0
        %1089 = vmatprep.subr.mxu0 0.0
        %1090 = vmatpush2.msra.mxu0 0.0
        %1091 = vmatprep.mubr.f32.mxu0 0.0
        %1092 = vmatmul.mubr.f32.gmra.mxu0 %v1025
        %v1093 = vpop.f32.mrf.mxu0
        %v1094 = vadd.f32 0.0, %v1093
        %v1095 = vpop.f32.mrf.mxu0
        %1096 = vdwg.mxu0
        %1098 = vrot.lane.b32.xlu0 %v1094, 8
        %v1099 = vpop.permute.xlu0 %1098
        %vm1101 = vcmask 130112
        %1102 = vst.msk [vmem:[#allocation4] sm:$0xff] %vm1101, %v1099
        %1103 = vrot.lane.b32.xlu0 %v740, 112
        %v1104 = vpop.permute.xlu0 %1103
        %1105 = vrot.lane.b32.xlu0 %v741, 112
        %v1106 = vpop.permute.xlu0 %1105
        %1107 = vrot.lane.b32.xlu0 %v742, 112
        %v1108 = vpop.permute.xlu0 %1107
        %v1109 = vsel %vm752, %v1104, 0
        %v1111 = vsel %vm752, %v1106, 0
        %v1113 = vsel %vm752, %v1108, 0
        %1115 = vmatprep.subr.mxu0 0.0
        %1116 = vmatpush1.xpose.msra.mxu0 0.0
        %1117 = vmatprep.subr.mxu0 0.0
        %1118 = vmatpush1.xpose.msra.mxu0 0.0
        %1119 = vmatprep.subr.mxu0 0.0
        %1120 = vmatpush1.xpose.msra.mxu0 0.0
        %1121 = vmatprep.subr.mxu0 0.0
        %1122 = vmatpush1.xpose.msra.mxu0 0.0
        %1123 = vmatprep.subr.mxu0 0.0
        %1124 = vmatpush1.xpose.msra.mxu0 0.0
        %1125 = vmatprep.subr.mxu0 0.0
        %1126 = vmatpush1.xpose.msra.mxu0 0.0
        %1127 = vmatprep.subr.mxu0 0.0
        %1128 = vmatpush1.xpose.msra.mxu0 0.0
        %1129 = vmatprep.subr.mxu0 0.0
        %1130 = vmatpush1.xpose.msra.mxu0 0.0
        %1131 = vmatprep.subr.mxu0 0.0
        %1132 = vmatpush1.xpose.msra.mxu0 0.0
        %1133 = vmatprep.subr.mxu0 0.0
        %1134 = vmatpush1.xpose.msra.mxu0 0.0
        %1135 = vmatprep.subr.mxu0 0.0
        %1136 = vmatpush1.xpose.msra.mxu0 0.0
        %1137 = vmatprep.subr.mxu0 0.0
        %1138 = vmatpush1.xpose.msra.mxu0 0.0
        %1139 = vmatprep.subr.mxu0 0.0
        %1140 = vmatpush1.xpose.msra.mxu0 0.0
        %1141 = vmatprep.subr.mxu0 0.0
        %1142 = vmatpush1.xpose.msra.mxu0 0.0
        %1143 = vmatprep.subr.mxu0 0.0
        %1144 = vmatpush1.xpose.msra.mxu0 %v1113
        %1145 = vmatprep.subr.mxu0 0.0
        %1146 = vmatpush1.xpose.msra.mxu0 %v1111
        %1147 = vmatprep.subr.mxu0 0.0
        %1148 = vmatpush2.xpose.msra.mxu0 0.0
        %1149 = vmatprep.subr.mxu0 0.0
        %1150 = vmatpush2.xpose.msra.mxu0 0.0
        %1151 = vmatprep.subr.mxu0 0.0
        %1152 = vmatpush2.xpose.msra.mxu0 0.0
        %1153 = vmatprep.subr.mxu0 0.0
        %1154 = vmatpush2.xpose.msra.mxu0 0.0
        %1155 = vmatprep.subr.mxu0 0.0
        %1156 = vmatpush2.xpose.msra.mxu0 0.0
        %1157 = vmatprep.subr.mxu0 0.0
        %1158 = vmatpush2.xpose.msra.mxu0 0.0
        %1159 = vmatprep.subr.mxu0 0.0
        %1160 = vmatpush2.xpose.msra.mxu0 0.0
        %1161 = vmatprep.subr.mxu0 0.0
        %1162 = vmatpush2.xpose.msra.mxu0 0.0
        %1163 = vmatprep.subr.mxu0 0.0
        %1164 = vmatpush2.xpose.msra.mxu0 0.0
        %1165 = vmatprep.subr.mxu0 0.0
        %1166 = vmatpush2.xpose.msra.mxu0 0.0
        %1167 = vmatprep.subr.mxu0 0.0
        %1168 = vmatpush2.xpose.msra.mxu0 0.0
        %1169 = vmatprep.subr.mxu0 0.0
        %1170 = vmatpush2.xpose.msra.mxu0 0.0
        %1171 = vmatprep.subr.mxu0 0.0
        %1172 = vmatpush2.xpose.msra.mxu0 0.0
        %1173 = vmatprep.subr.mxu0 0.0
        %1174 = vmatpush2.xpose.msra.mxu0 0.0
        %1175 = vmatprep.subr.mxu0 0.0
        %1176 = vmatpush2.xpose.msra.mxu0 0.0
        %1177 = vmatprep.subr.mxu0 0.0
        %1178 = vmatpush2.xpose.msra.mxu0 0.0
        %1179 = vmatprep.mubr.f32.mxu0 0.0
        %1180 = vmatmul.mubr.f32.gmra.mxu0 %v1109
        %v1181 = vpop.f32.mrf.mxu0
        %v1182 = vadd.f32 0.0, %v1181
        %v1183 = vpop.f32.mrf.mxu0
        %1184 = vdwg.mxu0
        %v1185 = vsel %vm751, %v1182, -inf
        %v1186 = vsel %vm833, %v1185, -inf
        %1187 = vmax.xlane.f32.xlu0 %v1186
        %v1188 = vpop.xlane.xlu0 %1187
        %v1189 = vsub.f32 %v1185, %v1188
        %v1190 = vmul.f32 %v1189, 1.442695
        %v1191 = vpow.pop %v1190
        %v1192 = vsel %vm833, %v1191, 0.0
        %1193 = vadd.xlane.f32.xlu0 %v1192
        %v1194 = vpop.xlane.xlu0 %1193
        %v1195 = vrcp.pop %v1194
        %v1196 = vmul.f32 %v1191, %v1195
        %s1197 = scalar_lea.vmem %s462, 16 [#allocation15]
        %1198 = vst.msk [vmem:[%s1197] sm:$0xff] %vm833, %v1196
        %1199 = vrot.lane.b32.xlu0 %v743, 112
        %v1200 = vpop.permute.xlu0 %1199
        %1201 = vrot.lane.b32.xlu0 %v744, 112
        %v1202 = vpop.permute.xlu0 %1201
        %v1206 = vsel %vm833, %v1196, 0
        %1208 = vmatprep.subr.mxu0 0.0
        %1209 = vmatpush1.msra.mxu0 0.0
        %1210 = vmatprep.subr.mxu0 0.0
        %1211 = vmatpush1.msra.mxu0 0.0
        %1212 = vmatprep.subr.mxu0 0.0
        %1213 = vmatpush1.msra.mxu0 0.0
        %1214 = vmatprep.subr.mxu0 0.0
        %1215 = vmatpush1.msra.mxu0 0.0
        %1216 = vmatprep.subr.mxu0 0.0
        %1217 = vmatpush1.msra.mxu0 0.0
        %1218 = vmatprep.subr.mxu0 0.0
        %1219 = vmatpush1.msra.mxu0 0.0
        %1220 = vmatprep.subr.mxu0 0.0
        %1221 = vmatpush1.msra.mxu0 0.0
        %1222 = vmatprep.subr.mxu0 0.0
        %1223 = vmatpush1.msra.mxu0 0.0
        %1224 = vmatprep.subr.mxu0 0.0
        %1225 = vmatpush1.msra.mxu0 0.0
        %1226 = vmatprep.subr.mxu0 0.0
        %1227 = vmatpush1.msra.mxu0 0.0
        %1228 = vmatprep.subr.mxu0 0.0
        %1229 = vmatpush1.msra.mxu0 0.0
        %1230 = vmatprep.subr.mxu0 0.0
        %1231 = vmatpush1.msra.mxu0 0.0
        %1232 = vmatprep.subr.mxu0 0.0
        %1233 = vmatpush1.msra.mxu0 0.0
        %1234 = vmatprep.subr.mxu0 0.0
        %1235 = vmatpush1.msra.mxu0 0.0
        %1236 = vmatprep.subr.mxu0 0.0
        %1237 = vmatpush1.msra.mxu0 %v1202
        %1238 = vmatprep.subr.mxu0 0.0
        %1239 = vmatpush1.msra.mxu0 %v1200
        %1240 = vmatprep.subr.mxu0 0.0
        %1241 = vmatpush2.msra.mxu0 0.0
        %1242 = vmatprep.subr.mxu0 0.0
        %1243 = vmatpush2.msra.mxu0 0.0
        %1244 = vmatprep.subr.mxu0 0.0
        %1245 = vmatpush2.msra.mxu0 0.0
        %1246 = vmatprep.subr.mxu0 0.0
        %1247 = vmatpush2.msra.mxu0 0.0
        %1248 = vmatprep.subr.mxu0 0.0
        %1249 = vmatpush2.msra.mxu0 0.0
        %1250 = vmatprep.subr.mxu0 0.0
        %1251 = vmatpush2.msra.mxu0 0.0
        %1252 = vmatprep.subr.mxu0 0.0
        %1253 = vmatpush2.msra.mxu0 0.0
        %1254 = vmatprep.subr.mxu0 0.0
        %1255 = vmatpush2.msra.mxu0 0.0
        %1256 = vmatprep.subr.mxu0 0.0
        %1257 = vmatpush2.msra.mxu0 0.0
        %1258 = vmatprep.subr.mxu0 0.0
        %1259 = vmatpush2.msra.mxu0 0.0
        %1260 = vmatprep.subr.mxu0 0.0
        %1261 = vmatpush2.msra.mxu0 0.0
        %1262 = vmatprep.subr.mxu0 0.0
        %1263 = vmatpush2.msra.mxu0 0.0
        %1264 = vmatprep.subr.mxu0 0.0
        %1265 = vmatpush2.msra.mxu0 0.0
        %1266 = vmatprep.subr.mxu0 0.0
        %1267 = vmatpush2.msra.mxu0 0.0
        %1268 = vmatprep.subr.mxu0 0.0
        %1269 = vmatpush2.msra.mxu0 0.0
        %1270 = vmatprep.subr.mxu0 0.0
        %1271 = vmatpush2.msra.mxu0 0.0
        %1272 = vmatprep.mubr.f32.mxu0 0.0
        %1273 = vmatmul.mubr.f32.gmra.mxu0 %v1206
        %v1274 = vpop.f32.mrf.mxu0
        %v1275 = vadd.f32 0.0, %v1274
        %v1276 = vpop.f32.mrf.mxu0
        %1277 = vdwg.mxu0
        %1279 = vrot.lane.b32.xlu0 %v1275, 16
        %v1280 = vpop.permute.xlu0 %1279
        %vm1282 = vcmask 195712
        %1283 = vst.msk [vmem:[#allocation4] sm:$0xff] %vm1282, %v1280
        %1284 = vrot.lane.b32.xlu0 %v740, 104
        %v1285 = vpop.permute.xlu0 %1284
        %1286 = vrot.lane.b32.xlu0 %v741, 104
        %v1287 = vpop.permute.xlu0 %1286
        %1288 = vrot.lane.b32.xlu0 %v742, 104
        %v1289 = vpop.permute.xlu0 %1288
        %v1290 = vsel %vm752, %v1285, 0
        %v1292 = vsel %vm752, %v1287, 0
        %v1294 = vsel %vm752, %v1289, 0
        %1296 = vmatprep.subr.mxu0 0.0
        %1297 = vmatpush1.xpose.msra.mxu0 0.0
        %1298 = vmatprep.subr.mxu0 0.0
        %1299 = vmatpush1.xpose.msra.mxu0 0.0
        %1300 = vmatprep.subr.mxu0 0.0
        %1301 = vmatpush1.xpose.msra.mxu0 0.0
        %1302 = vmatprep.subr.mxu0 0.0
        %1303 = vmatpush1.xpose.msra.mxu0 0.0
        %1304 = vmatprep.subr.mxu0 0.0
        %1305 = vmatpush1.xpose.msra.mxu0 0.0
        %1306 = vmatprep.subr.mxu0 0.0
        %1307 = vmatpush1.xpose.msra.mxu0 0.0
        %1308 = vmatprep.subr.mxu0 0.0
        %1309 = vmatpush1.xpose.msra.mxu0 0.0
        %1310 = vmatprep.subr.mxu0 0.0
        %1311 = vmatpush1.xpose.msra.mxu0 0.0
        %1312 = vmatprep.subr.mxu0 0.0
        %1313 = vmatpush1.xpose.msra.mxu0 0.0
        %1314 = vmatprep.subr.mxu0 0.0
        %1315 = vmatpush1.xpose.msra.mxu0 0.0
        %1316 = vmatprep.subr.mxu0 0.0
        %1317 = vmatpush1.xpose.msra.mxu0 0.0
        %1318 = vmatprep.subr.mxu0 0.0
        %1319 = vmatpush1.xpose.msra.mxu0 0.0
        %1320 = vmatprep.subr.mxu0 0.0
        %1321 = vmatpush1.xpose.msra.mxu0 0.0
        %1322 = vmatprep.subr.mxu0 0.0
        %1323 = vmatpush1.xpose.msra.mxu0 0.0
        %1324 = vmatprep.subr.mxu0 0.0
        %1325 = vmatpush1.xpose.msra.mxu0 %v1294
        %1326 = vmatprep.subr.mxu0 0.0
        %1327 = vmatpush1.xpose.msra.mxu0 %v1292
        %1328 = vmatprep.subr.mxu0 0.0
        %1329 = vmatpush2.xpose.msra.mxu0 0.0
        %1330 = vmatprep.subr.mxu0 0.0
        %1331 = vmatpush2.xpose.msra.mxu0 0.0
        %1332 = vmatprep.subr.mxu0 0.0
        %1333 = vmatpush2.xpose.msra.mxu0 0.0
        %1334 = vmatprep.subr.mxu0 0.0
        %1335 = vmatpush2.xpose.msra.mxu0 0.0
        %1336 = vmatprep.subr.mxu0 0.0
        %1337 = vmatpush2.xpose.msra.mxu0 0.0
        %1338 = vmatprep.subr.mxu0 0.0
        %1339 = vmatpush2.xpose.msra.mxu0 0.0
        %1340 = vmatprep.subr.mxu0 0.0
        %1341 = vmatpush2.xpose.msra.mxu0 0.0
        %1342 = vmatprep.subr.mxu0 0.0
        %1343 = vmatpush2.xpose.msra.mxu0 0.0
        %1344 = vmatprep.subr.mxu0 0.0
        %1345 = vmatpush2.xpose.msra.mxu0 0.0
        %1346 = vmatprep.subr.mxu0 0.0
        %1347 = vmatpush2.xpose.msra.mxu0 0.0
        %1348 = vmatprep.subr.mxu0 0.0
        %1349 = vmatpush2.xpose.msra.mxu0 0.0
        %1350 = vmatprep.subr.mxu0 0.0
        %1351 = vmatpush2.xpose.msra.mxu0 0.0
        %1352 = vmatprep.subr.mxu0 0.0
        %1353 = vmatpush2.xpose.msra.mxu0 0.0
        %1354 = vmatprep.subr.mxu0 0.0
        %1355 = vmatpush2.xpose.msra.mxu0 0.0
        %1356 = vmatprep.subr.mxu0 0.0
        %1357 = vmatpush2.xpose.msra.mxu0 0.0
        %1358 = vmatprep.subr.mxu0 0.0
        %1359 = vmatpush2.xpose.msra.mxu0 0.0
        %1360 = vmatprep.mubr.f32.mxu0 0.0
        %1361 = vmatmul.mubr.f32.gmra.mxu0 %v1290
        %v1362 = vpop.f32.mrf.mxu0
        %v1363 = vadd.f32 0.0, %v1362
        %v1364 = vpop.f32.mrf.mxu0
        %1365 = vdwg.mxu0
        %v1366 = vsel %vm751, %v1363, -inf
        %v1367 = vsel %vm833, %v1366, -inf
        %1368 = vmax.xlane.f32.xlu0 %v1367
        %v1369 = vpop.xlane.xlu0 %1368
        %v1370 = vsub.f32 %v1366, %v1369
        %v1371 = vmul.f32 %v1370, 1.442695
        %v1372 = vpow.pop %v1371
        %v1373 = vsel %vm833, %v1372, 0.0
        %1374 = vadd.xlane.f32.xlu0 %v1373
        %v1375 = vpop.xlane.xlu0 %1374
        %v1376 = vrcp.pop %v1375
        %v1377 = vmul.f32 %v1372, %v1376
        %s1378 = scalar_lea.vmem %s462, 24 [#allocation15]
        %1379 = vst.msk [vmem:[%s1378] sm:$0xff] %vm833, %v1377
        %1380 = vrot.lane.b32.xlu0 %v743, 104
        %v1381 = vpop.permute.xlu0 %1380
        %1382 = vrot.lane.b32.xlu0 %v744, 104
        %v1383 = vpop.permute.xlu0 %1382
        %v1387 = vsel %vm833, %v1377, 0
        %1389 = vmatprep.subr.mxu0 0.0
        %1390 = vmatpush1.msra.mxu0 0.0
        %1391 = vmatprep.subr.mxu0 0.0
        %1392 = vmatpush1.msra.mxu0 0.0
        %1393 = vmatprep.subr.mxu0 0.0
        %1394 = vmatpush1.msra.mxu0 0.0
        %1395 = vmatprep.subr.mxu0 0.0
        %1396 = vmatpush1.msra.mxu0 0.0
        %1397 = vmatprep.subr.mxu0 0.0
        %1398 = vmatpush1.msra.mxu0 0.0
        %1399 = vmatprep.subr.mxu0 0.0
        %1400 = vmatpush1.msra.mxu0 0.0
        %1401 = vmatprep.subr.mxu0 0.0
        %1402 = vmatpush1.msra.mxu0 0.0
        %1403 = vmatprep.subr.mxu0 0.0
        %1404 = vmatpush1.msra.mxu0 0.0
        %1405 = vmatprep.subr.mxu0 0.0
        %1406 = vmatpush1.msra.mxu0 0.0
        %1407 = vmatprep.subr.mxu0 0.0
        %1408 = vmatpush1.msra.mxu0 0.0
        %1409 = vmatprep.subr.mxu0 0.0
        %1410 = vmatpush1.msra.mxu0 0.0
        %1411 = vmatprep.subr.mxu0 0.0
        %1412 = vmatpush1.msra.mxu0 0.0
        %1413 = vmatprep.subr.mxu0 0.0
        %1414 = vmatpush1.msra.mxu0 0.0
        %1415 = vmatprep.subr.mxu0 0.0
        %1416 = vmatpush1.msra.mxu0 0.0
        %1417 = vmatprep.subr.mxu0 0.0
        %1418 = vmatpush1.msra.mxu0 %v1383
        %1419 = vmatprep.subr.mxu0 0.0
        %1420 = vmatpush1.msra.mxu0 %v1381
        %1421 = vmatprep.subr.mxu0 0.0
        %1422 = vmatpush2.msra.mxu0 0.0
        %1423 = vmatprep.subr.mxu0 0.0
        %1424 = vmatpush2.msra.mxu0 0.0
        %1425 = vmatprep.subr.mxu0 0.0
        %1426 = vmatpush2.msra.mxu0 0.0
        %1427 = vmatprep.subr.mxu0 0.0
        %1428 = vmatpush2.msra.mxu0 0.0
        %1429 = vmatprep.subr.mxu0 0.0
        %1430 = vmatpush2.msra.mxu0 0.0
        %1431 = vmatprep.subr.mxu0 0.0
        %1432 = vmatpush2.msra.mxu0 0.0
        %1433 = vmatprep.subr.mxu0 0.0
        %1434 = vmatpush2.msra.mxu0 0.0
        %1435 = vmatprep.subr.mxu0 0.0
        %1436 = vmatpush2.msra.mxu0 0.0
        %1437 = vmatprep.subr.mxu0 0.0
        %1438 = vmatpush2.msra.mxu0 0.0
        %1439 = vmatprep.subr.mxu0 0.0
        %1440 = vmatpush2.msra.mxu0 0.0
        %1441 = vmatprep.subr.mxu0 0.0
        %1442 = vmatpush2.msra.mxu0 0.0
        %1443 = vmatprep.subr.mxu0 0.0
        %1444 = vmatpush2.msra.mxu0 0.0
        %1445 = vmatprep.subr.mxu0 0.0
        %1446 = vmatpush2.msra.mxu0 0.0
        %1447 = vmatprep.subr.mxu0 0.0
        %1448 = vmatpush2.msra.mxu0 0.0
        %1449 = vmatprep.subr.mxu0 0.0
        %1450 = vmatpush2.msra.mxu0 0.0
        %1451 = vmatprep.subr.mxu0 0.0
        %1452 = vmatpush2.msra.mxu0 0.0
        %1453 = vmatprep.mubr.f32.mxu0 0.0
        %1454 = vmatmul.mubr.f32.gmra.mxu0 %v1387
        %v1455 = vpop.f32.mrf.mxu0
        %v1456 = vadd.f32 0.0, %v1455
        %v1457 = vpop.f32.mrf.mxu0
        %1458 = vdwg.mxu0
        %1460 = vrot.lane.b32.xlu0 %v1456, 24
        %v1461 = vpop.permute.xlu0 %1460
        %vm1463 = vcmask 261312
        %1464 = vst.msk [vmem:[#allocation4] sm:$0xff] %vm1463, %v1461
        %v1465 = vld [vmem:[#allocation4] sm:$0xff]
        %v1466 = vld [vmem:[#allocation13] sm:$0xff]
        %v1467 = vld [vmem:[#allocation13 + $0x8] sm:$0xff]
        %v1468 = vld [vmem:[#allocation13 + $0x10] sm:$0xff]
        %v1469 = vld [vmem:[#allocation13 + $0x18] sm:$0xff]
        %v1470 = vld [vmem:[%s8] sm:$0x1]
        %v1472 = vlaneseq
        %v1473 = vshrl.u32 %v1472, 7
        %v1474 = vsub.s32 0, %v1473
        %v1475 = vrot.slane %v1470, %v1474
        %v1478 = vsel %vm666, %v1465, 0
        %1480 = vmatprep.subr.mxu0 0.0
        %1481 = vmatpush1.msra.mxu0 0.0
        %1482 = vmatprep.subr.mxu0 0.0
        %1483 = vmatpush1.msra.mxu0 0.0
        %1484 = vmatprep.subr.mxu0 0.0
        %1485 = vmatpush1.msra.mxu0 0.0
        %1486 = vmatprep.subr.mxu0 0.0
        %1487 = vmatpush1.msra.mxu0 0.0
        %1488 = vmatprep.subr.mxu0 0.0
        %1489 = vmatpush1.msra.mxu0 0.0
        %1490 = vmatprep.subr.mxu0 0.0
        %1491 = vmatpush1.msra.mxu0 0.0
        %1492 = vmatprep.subr.mxu0 0.0
        %1493 = vmatpush1.msra.mxu0 0.0
        %1494 = vmatprep.subr.mxu0 0.0
        %1495 = vmatpush1.msra.mxu0 0.0
        %1496 = vmatprep.subr.mxu0 0.0
        %1497 = vmatpush1.msra.mxu0 0.0
        %1498 = vmatprep.subr.mxu0 0.0
        %1499 = vmatpush1.msra.mxu0 0.0
        %1500 = vmatprep.subr.mxu0 0.0
        %1501 = vmatpush1.msra.mxu0 0.0
        %1502 = vmatprep.subr.mxu0 0.0
        %1503 = vmatpush1.msra.mxu0 0.0
        %1504 = vmatprep.subr.mxu0 0.0
        %1505 = vmatpush1.msra.mxu0 %v1469
        %1506 = vmatprep.subr.mxu0 0.0
        %1507 = vmatpush1.msra.mxu0 %v1468
        %1508 = vmatprep.subr.mxu0 0.0
        %1509 = vmatpush1.msra.mxu0 %v1467
        %1510 = vmatprep.subr.mxu0 0.0
        %1511 = vmatpush1.msra.mxu0 %v1466
        %1512 = vmatprep.subr.mxu0 0.0
        %1513 = vmatpush2.msra.mxu0 0.0
        %1514 = vmatprep.subr.mxu0 0.0
        %1515 = vmatpush2.msra.mxu0 0.0
        %1516 = vmatprep.subr.mxu0 0.0
        %1517 = vmatpush2.msra.mxu0 0.0
        %1518 = vmatprep.subr.mxu0 0.0
        %1519 = vmatpush2.msra.mxu0 0.0
        %1520 = vmatprep.subr.mxu0 0.0
        %1521 = vmatpush2.msra.mxu0 0.0
        %1522 = vmatprep.subr.mxu0 0.0
        %1523 = vmatpush2.msra.mxu0 0.0
        %1524 = vmatprep.subr.mxu0 0.0
        %1525 = vmatpush2.msra.mxu0 0.0
        %1526 = vmatprep.subr.mxu0 0.0
        %1527 = vmatpush2.msra.mxu0 0.0
        %1528 = vmatprep.subr.mxu0 0.0
        %1529 = vmatpush2.msra.mxu0 0.0
        %1530 = vmatprep.subr.mxu0 0.0
        %1531 = vmatpush2.msra.mxu0 0.0
        %1532 = vmatprep.subr.mxu0 0.0
        %1533 = vmatpush2.msra.mxu0 0.0
        %1534 = vmatprep.subr.mxu0 0.0
        %1535 = vmatpush2.msra.mxu0 0.0
        %1536 = vmatprep.subr.mxu0 0.0
        %1537 = vmatpush2.msra.mxu0 0.0
        %1538 = vmatprep.subr.mxu0 0.0
        %1539 = vmatpush2.msra.mxu0 0.0
        %1540 = vmatprep.subr.mxu0 0.0
        %1541 = vmatpush2.msra.mxu0 0.0
        %1542 = vmatprep.subr.mxu0 0.0
        %1543 = vmatpush2.msra.mxu0 0.0
        %1544 = vmatprep.mubr.f32.mxu0 0.0
        %1545 = vmatmul.mubr.f32.gmra.mxu0 %v1478
        %v1546 = vpop.f32.mrf.mxu0
        %v1547 = vadd.f32 %v1475, %v1546
        %v1548 = vpop.f32.mrf.mxu0
        %1549 = vdwg.mxu0
        %1550 = vst.msk [vmem:[%s455] sm:$0xff] %vm666, %v1547
        %s1551 = sand.u32 %s249, 1
        %s1552 = scalar_lea.sflag [#allocation7], %s1551
        %s1553 = sand.u32 %s249, 1
        %s1554 = smul.addr %s1553, 8
        %s1555 = scalar_lea.vmem [#allocation14], %s1554
        %s1556 = sand.u32 %s277, 1
        %s1557 = scalar_lea.sflag [#allocation16], %s1556
        %s1558 = sand.u32 %s277, 1
        %s1559 = smul.addr %s1558, 32
        %s1560 = scalar_lea.vmem [#allocation15], %s1559
        // Predicated region
        $region81: #{tpu_custom_call.1} parent=55 // pred_check
          %p1561 = pneg %p259
        $region82: #{tpu_custom_call.1} parent=55 // pred_check_branch
          %1563 = sbr.rel (%p1561) target = $region84
        $region83: #{tpu_custom_call.1} parent=55 // pred_region
          %s1565 = ssub.s32 128, 128
          %1566 = vsyncadd %s1552, %s1565
          %s1567 = smul.addr %s37, 2
          %s1568 = sadd.s32 %s38, %s1567
          %s1569 = smul.addr %s1568, 128
          %s1570 = scalar_lea.hbm %s9, %s1569
          %s1572 = sshll.u32 %s1555, 4
          %s1573 = int_to_ptr.vmem [resolvable:$true] %s1572
          %1575 = dma.vmem_to_hbm [thread:$0]  %s1573, 128, %s1570, %s1552
        $region84: #{tpu_custom_call.1} parent=55 // pred_fallthru
          _
        // Predicated region
        $region85: #{tpu_custom_call.1} parent=55 // pred_check
          %p1576 = pneg %p287
        $region86: #{tpu_custom_call.1} parent=55 // pred_check_branch
          %1578 = sbr.rel (%p1576) target = $region88
        $region87: #{tpu_custom_call.1} parent=55 // pred_region
          %s1580 = ssub.s32 512, 512
          %1581 = vsyncadd %s1557, %s1580
          %s1582 = smul.addr %s37, 8
          %s1583 = sadd.s32 %s38, %s1582
          %s1584 = smul.addr %s1583, 128
          %s1585 = scalar_lea.hbm %s10, %s1584
          %s1586 = sshll.u32 %s1560, 4
          %s1587 = int_to_ptr.vmem [resolvable:$true] %s1586
          %1592 = dma.vmem_to_hbm [thread:$0]  %s1587, 512, %s1585, %s1557, 128, 256, 8
        $region88: #{tpu_custom_call.1} parent=55 // pred_fallthru
          _
      $region56: #{tpu_custom_call.1} parent=5 // pred_fallthru
        _
      %p1593 = scmp.le.s32.totalorder 2, %s28
      // Predicated region
      $region89: #{tpu_custom_call.1} parent=5 // pred_check
        %p1594 = pneg %p1593
      $region90: #{tpu_custom_call.1} parent=5 // pred_check_branch
        %1596 = sbr.rel (%p1594) target = $region92
      $region91: #{tpu_custom_call.1} parent=5 // pred_region
        %s1597 = ssub.s32 %s28, 2
        // Predicated region
        $region93: #{tpu_custom_call.1} parent=91 // pred_check
          %p1598 = pneg %p265
        $region94: #{tpu_custom_call.1} parent=91 // pred_check_branch
          %1600 = sbr.rel (%p1598) target = $region96
        $region95: #{tpu_custom_call.1} parent=91 // pred_region
          %s1601 = sand.u32 %s250, 1
          %s1602 = scalar_lea.sflag [#allocation7], %s1601
          %s1603 = sand.u32 %s250, 1
          %s1604 = smul.addr %s1603, 8
          %s1605 = scalar_lea.vmem [#allocation14], %s1604
          %1606 = dma.done %s1602, 128
        $region96: #{tpu_custom_call.1} parent=91 // pred_fallthru
          _
        // Predicated region
        $region97: #{tpu_custom_call.1} parent=91 // pred_check
          %p1607 = pneg %p293
        $region98: #{tpu_custom_call.1} parent=91 // pred_check_branch
          %1609 = sbr.rel (%p1607) target = $region100
        $region99: #{tpu_custom_call.1} parent=91 // pred_region
          %s1610 = sand.u32 %s278, 1
          %s1611 = scalar_lea.sflag [#allocation16], %s1610
          %s1612 = sand.u32 %s278, 1
          %s1613 = smul.addr %s1612, 32
          %s1614 = scalar_lea.vmem [#allocation15], %s1613
          %1615 = dma.done %s1611, 512
        $region100: #{tpu_custom_call.1} parent=91 // pred_fallthru
          _
      $region92: #{tpu_custom_call.1} parent=5 // pred_fallthru
        _
    $region6: #{tpu_custom_call.1} parent=1 // loop_footer
      %s32 = sadd.s32 1, %s28
    $region7: #{tpu_custom_call.1} parent=1 // loop_footer_branch
      %27 = sbr.rel target = $region3
    $region8: #{tpu_custom_call.1} parent=1 // loop_exit
      _
    %1616 = vsyncpa [#allocation6], 1
    %s1617 = scalar_lea.sflag [#allocation6], 1
    %1618 = vsyncpa %s1617, 1
    %1619 = vsyncpa [#allocation9], 1
    %1620 = vsyncpa [#allocation12], 1
    %1621 = vsyncpa [#allocation7], 1
    %s1622 = scalar_lea.sflag [#allocation7], 1
    %1623 = vsyncpa %s1622, 1
    %1624 = vsyncpa [#allocation16], 1
    %s1625 = scalar_lea.sflag [#allocation16], 1
    %1626 = vsyncpa %s1625, 1

</llo_original>
